<compile_context>
chip_gen: v6e
topology: v6e:2x2x1
jax: 0.10.0
libtpu: 0.0.40
codegen_flags: <defaults>
</compile_context>

<pallas_src>
import math
import functools

import jax
import jax.numpy as jnp
from jax import lax
from jax.experimental import pallas as pl
from jax.experimental.pallas import tpu as pltpu


# ---------------------------------------------------------------------------
# Kernel 1 (fused): node MLP + heuristic measure tile + row-sum accumulator
#   grid = (N/tm, N/tn); j (column blocks) is the reduction axis for rowsum.
# ---------------------------------------------------------------------------
def _heuristic_kernel(x_ref, w1_ref, b1_ref, w2_ref, b2_ref,
                      hm_ref, rowsum_ref, emb_scratch):
    i = pl.program_id(0)
    j = pl.program_id(1)
    tm, tn = hm_ref.shape

    @pl.when(j == 0)
    def _():
        # Full-node embedding computed once per row block; it is i-independent,
        # so re-initialising it at every (i, j==0) is redundant-but-correct and
        # stays valid under megacore sharding of the parallel row axis.
        h = jnp.dot(x_ref[...], w1_ref[...], preferred_element_type=jnp.float32)
        h = jnp.maximum(h + b1_ref[...], 0.0)
        emb_scratch[...] = (
            jnp.dot(h, w2_ref[...], preferred_element_type=jnp.float32)
            + b2_ref[...]
        )
        # Zero-init the row-sum accumulator (resident across the j axis).
        rowsum_ref[...] = jnp.zeros_like(rowsum_ref)

    # Row / column tiles of E are aligned sublane slices of the VMEM scratch.
    row_off = pl.multiple_of(i * tm, tm)
    col_off = pl.multiple_of(j * tn, tn)
    emb_row = emb_scratch[pl.ds(row_off, tm), :]
    emb_col = emb_scratch[pl.ds(col_off, tn), :]

    # E_row @ E_col^T without materializing a transpose: contract last dims.
    s = lax.dot_general(
        emb_row, emb_col,
        dimension_numbers=(((1,), (1,)), ((), ())),
        preferred_element_type=jnp.float32,
    )
    hm_tile = jax.nn.sigmoid(s)          # exactly 1 transcendental per element
    hm_ref[...] = hm_tile
    # Row reduction done while the tile is in vregs (XLU slot, ~free here).
    rowsum_ref[...] += jnp.sum(hm_tile, axis=1, keepdims=True)


# ---------------------------------------------------------------------------
# Kernel 2: predict_model "Net2"
#   z      = relu(x @ W3 + b3)
#   logits = sum(z * w4_row, axis=1) + b4 + rowsum(hm)      -> [N, 1]
#   log    = log_softmax(logits, axis=0)                    -> [N, 1]
#   (single block: whole-N reduction done on-chip)
# ---------------------------------------------------------------------------
def _predict_kernel(x_ref, rowsum_ref, w3_ref, b3_ref, w4_ref, b4_ref, log_ref):
    z = jnp.dot(x_ref[...], w3_ref[...], preferred_element_type=jnp.float32)
    z = jnp.maximum(z + b3_ref[...], 0.0)
    # [N,H] x [H,1] as VPU mul + lane reduce (w4 passed as a [1,H] row) --
    # keeps the MXU free and avoids a lane-sparse matmul result.
    proj = jnp.sum(z * w4_ref[...], axis=1, keepdims=True)          # [N, 1]
    logits = proj + b4_ref[0, 0] + rowsum_ref[...]                  # [N, 1]
    # Numerically-stable log_softmax over the node axis (axis 0).
    m = jnp.max(logits, axis=0, keepdims=True)
    lse = jnp.log(jnp.sum(jnp.exp(logits - m), axis=0, keepdims=True)) + m
    # TODO(synk): for very large N, tile this kernel over rows with a two-pass
    # (running max / running sum) grid reduction and a lane-dense logits layout.
    log_ref[...] = logits - lse


_VMEM = pl.BlockSpec(memory_space=pltpu.MemorySpace.VMEM)
_SMEM = pl.BlockSpec(memory_space=pltpu.MemorySpace.SMEM)


# ---------------------------------------------------------------------------
# Parameter init (mirrors Net3.init_parameters: U(-stdv, stdv), stdv=1/sqrt(last dim))
# ---------------------------------------------------------------------------
def init_params(key, d_in, hidden):
    def uni(key, shape):
        stdv = 1.0 / math.sqrt(shape[-1])
        return jax.random.uniform(key, shape, jnp.float32, -stdv, stdv)

    ks = jax.random.split(key, 8)
    return {
        # heuristic_model (Net)
        "w1": uni(ks[0], (d_in, hidden)),
        "b1": uni(ks[1], (1, hidden)),
        "w2": uni(ks[2], (hidden, hidden)),
        "b2": uni(ks[3], (1, hidden)),
        # predict_model (Net2)
        "w3": uni(ks[4], (d_in, hidden)),
        "b3": uni(ks[5], (1, hidden)),
        "w4": uni(ks[6], (hidden, 1)),
        "b4": uni(ks[7], (1, 1)),
    }


# ---------------------------------------------------------------------------
# Net3.forward
# ---------------------------------------------------------------------------
@functools.partial(jax.jit, static_argnames=("k", "tm", "tn"))
def net3_forward(params, x, k=4, tm=128, tn=128):
    n, d = x.shape
    hidden = params["w1"].shape[1]
    tm = min(tm, n)
    tn = min(tn, n)
    assert n % tm == 0 and n % tn == 0, "demo assumes N divisible by tile size"
    gi, gj = n // tm, n // tn

    # --- fused heuristic pass: hm tiles + hm row-sum ---
    heuristic_measure, hm_rowsum = pl.pallas_call(
        _heuristic_kernel,
        out_shape=(
            jax.ShapeDtypeStruct((n, n), jnp.float32),
            jax.ShapeDtypeStruct((n, 1), jnp.float32),
        ),
        grid_spec=pltpu.PrefetchScalarGridSpec(
            num_scalar_prefetch=0,
            grid=(gi, gj),
            in_specs=[
                pl.BlockSpec((n, d), lambda i, j: (0, 0)),            # x (full)
                pl.BlockSpec((d, hidden), lambda i, j: (0, 0)),       # w1
                pl.BlockSpec((1, hidden), lambda i, j: (0, 0)),       # b1
                pl.BlockSpec((hidden, hidden), lambda i, j: (0, 0)),  # w2
                pl.BlockSpec((1, hidden), lambda i, j: (0, 0)),       # b2
            ],
            out_specs=[
                pl.BlockSpec((tm, tn), lambda i, j: (i, j)),          # hm tile
                pl.BlockSpec((tm, 1), lambda i, j: (i, 0)),           # rowsum acc
            ],
            scratch_shapes=[pltpu.VMEM((n, hidden), jnp.float32)],    # full E
        ),
        compiler_params=pltpu.CompilerParams(
            dimension_semantics=("parallel", "arbitrary")),
    )(x, params["w1"], params["b1"], params["w2"], params["b2"])

    # --- predict_model: consumes only the [N,1] row-sum, not the N^2 hm ---
    log = pl.pallas_call(
        _predict_kernel,
        out_shape=jax.ShapeDtypeStruct((n, 1), jnp.float32),
        in_specs=[_VMEM, _VMEM, _VMEM, _VMEM, _VMEM, _SMEM],
        out_specs=_VMEM,
    )(x, hm_rowsum, params["w3"], params["b3"], params["w4"].T, params["b4"])

    # TODO(synk): top_k has no clean Pallas TPU primitive; done in plain JAX glue.
    topk_vals, topk_idx = jax.lax.top_k(log[:, 0], k)
    return heuristic_measure, log, (topk_vals, topk_idx)


# ---------------------------------------------------------------------------
# Pure-JAX reference (for a cheap correctness check)
# ---------------------------------------------------------------------------
def net3_reference(params, x, k=4):
    h = jnp.maximum(x @ params["w1"] + params["b1"], 0.0)
    emb = h @ params["w2"] + params["b2"]
    hm = jax.nn.sigmoid(emb @ emb.T)
    z = jnp.maximum(x @ params["w3"] + params["b3"], 0.0)
    logits = z @ params["w4"] + params["b4"] + jnp.sum(hm, axis=1, keepdims=True)
    log = jax.nn.log_softmax(logits, axis=0)
    return hm, log, jax.lax.top_k(log[:, 0], k)


# ---------------------------------------------------------------------------
if __name__ == "__main__":
    N, D, H, K = 256, 16, 32, 4   # nodes, feature dim, hidden dim, top-k

    key = jax.random.PRNGKey(0)
    k_param, k_x = jax.random.split(key)
    params = init_params(k_param, D, H)
    x = jax.random.normal(k_x, (N, D), jnp.float32)

    hm, log, (tk_vals, tk_idx) = net3_forward(params, x, k=K)
    jax.block_until_ready((hm, log, tk_vals, tk_idx))

    assert hm.shape == (N, N)
    assert log.shape == (N, 1)
    assert tk_vals.shape == (K,) and tk_idx.shape == (K,)

    # correctness vs pure-JAX reference
    hm_ref, log_ref, (tv_ref, ti_ref) = net3_reference(params, x, k=K)
    assert jnp.allclose(hm, hm_ref, rtol=1e-3, atol=1e-3)
    assert jnp.allclose(log, log_ref, rtol=1e-3, atol=1e-3)

    print("KERNEL_OK")
</pallas_src>

<mosaic_0001>
module attributes {stable_mosaic.version = 11 : i64} {
  func.func @_predict_kernel(%arg0: memref<256x16xf32, #tpu.memory_space<vmem>>, %arg1: memref<256x1xf32, #tpu.memory_space<vmem>>, %arg2: memref<16x32xf32, #tpu.memory_space<vmem>>, %arg3: memref<1x32xf32, #tpu.memory_space<vmem>>, %arg4: memref<1x32xf32, #tpu.memory_space<vmem>>, %arg5: memref<1x1xf32, #tpu.memory_space<smem>>, %arg6: memref<256x1xf32, #tpu.memory_space<vmem>>) attributes {dimension_semantics = [], scalar_prefetch = 0 : i64, scratch_operands = 0 : i64, tpu.core_type = #tpu.core_type<tc>} {
    %c0 = arith.constant 0 : index
    %c0_0 = arith.constant 0 : index
    %0 = vector.load %arg0[%c0, %c0_0] : memref<256x16xf32, #tpu.memory_space<vmem>>, vector<256x16xf32>
    %c0_1 = arith.constant 0 : index
    %c0_2 = arith.constant 0 : index
    %1 = vector.load %arg2[%c0_1, %c0_2] : memref<16x32xf32, #tpu.memory_space<vmem>>, vector<16x32xf32>
    %cst = arith.constant dense<0.000000e+00> : vector<256x32xf32>
    %2 = tpu.matmul %0, %1, %cst {dimension_numbers = #tpu.dot_dimension_numbers<[1], [0], [0], [1], [0, 0, 1, 1], [], []>} : vector<256x16xf32>, vector<16x32xf32>, vector<256x32xf32> -> vector<256x32xf32>
    %c0_3 = arith.constant 0 : index
    %c0_4 = arith.constant 0 : index
    %3 = vector.load %arg3[%c0_3, %c0_4] : memref<1x32xf32, #tpu.memory_space<vmem>>, vector<1x32xf32>
    %4 = vector.broadcast %3 : vector<1x32xf32> to vector<256x32xf32>
    %5 = arith.addf %2, %4 : vector<256x32xf32>
    %cst_5 = arith.constant 0.000000e+00 : f32
    %6 = vector.broadcast %cst_5 : f32 to vector<256x32xf32>
    %7 = arith.maximumf %5, %6 : vector<256x32xf32>
    %c0_6 = arith.constant 0 : index
    %c0_7 = arith.constant 0 : index
    %8 = vector.load %arg4[%c0_6, %c0_7] : memref<1x32xf32, #tpu.memory_space<vmem>>, vector<1x32xf32>
    %9 = vector.broadcast %8 : vector<1x32xf32> to vector<256x32xf32>
    %10 = arith.mulf %7, %9 : vector<256x32xf32>
    %cst_8 = arith.constant dense<0.000000e+00> : vector<256xf32>
    %11 = vector.multi_reduction <add>, %10, %cst_8 [1] : vector<256x32xf32> to vector<256xf32>
    %12 = vector.shape_cast %11 : vector<256xf32> to vector<256x1xf32>
    %c0_9 = arith.constant 0 : index
    %c0_10 = arith.constant 0 : index
    %13 = memref.load %arg5[%c0_9, %c0_10] : memref<1x1xf32, #tpu.memory_space<smem>>
    %14 = vector.broadcast %13 : f32 to vector<256x1xf32>
    %15 = arith.addf %12, %14 : vector<256x1xf32>
    %c0_11 = arith.constant 0 : index
    %c0_12 = arith.constant 0 : index
    %16 = vector.load %arg1[%c0_11, %c0_12] : memref<256x1xf32, #tpu.memory_space<vmem>>, vector<256x1xf32>
    %17 = arith.addf %15, %16 : vector<256x1xf32>
    %cst_13 = arith.constant dense<0xFF800000> : vector<1xf32>
    %18 = vector.multi_reduction <maximumf>, %17, %cst_13 [0] : vector<256x1xf32> to vector<1xf32>
    %19 = vector.shape_cast %18 : vector<1xf32> to vector<1x1xf32>
    %20 = vector.broadcast %19 : vector<1x1xf32> to vector<256x1xf32>
    %21 = arith.subf %17, %20 : vector<256x1xf32>
    %22 = math.exp %21 : vector<256x1xf32>
    %cst_14 = arith.constant dense<0.000000e+00> : vector<1xf32>
    %23 = vector.multi_reduction <add>, %22, %cst_14 [0] : vector<256x1xf32> to vector<1xf32>
    %24 = vector.shape_cast %23 : vector<1xf32> to vector<1x1xf32>
    %25 = math.log %24 : vector<1x1xf32>
    %26 = arith.addf %25, %19 : vector<1x1xf32>
    %27 = vector.broadcast %26 : vector<1x1xf32> to vector<256x1xf32>
    %28 = arith.subf %17, %27 : vector<256x1xf32>
    %c0_15 = arith.constant 0 : index
    %c0_16 = arith.constant 0 : index
    %29 = vector.load %arg6[%c0_15, %c0_16] : memref<256x1xf32, #tpu.memory_space<vmem>>, vector<256x1xf32>
    tpu.vector_store %arg6[%c0_15, %c0_16], %28 {strides = array<i32>} : memref<256x1xf32, #tpu.memory_space<vmem>>, vector<256x1xf32>,
    return
  }
}

module attributes {stable_mosaic.version = 11 : i64} {
  func.func @_heuristic_kernel(%arg0: i32, %arg1: i32, %arg2: memref<256x16xf32, #tpu.memory_space<vmem>>, %arg3: memref<16x32xf32, #tpu.memory_space<vmem>>, %arg4: memref<1x32xf32, #tpu.memory_space<vmem>>, %arg5: memref<32x32xf32, #tpu.memory_space<vmem>>, %arg6: memref<1x32xf32, #tpu.memory_space<vmem>>, %arg7: memref<128x128xf32, #tpu.memory_space<vmem>>, %arg8: memref<128x1xf32, #tpu.memory_space<vmem>>, %arg9: memref<256x32xf32, #tpu.memory_space<vmem>>) attributes {dimension_semantics = [#tpu.dimension_semantics<parallel>, #tpu.dimension_semantics<arbitrary>], iteration_bounds = array<i64: 2, 2>, scalar_prefetch = 0 : i64, scratch_operands = 1 : i64, tpu.core_type = #tpu.core_type<tc>, window_params = [{pipeline_mode = #tpu.pipeline_mode<synchronous>, transform_indices = @transform_0, window_bounds = array<i64: 256, 16>}, {pipeline_mode = #tpu.pipeline_mode<synchronous>, transform_indices = @transform_1, window_bounds = array<i64: 16, 32>}, {pipeline_mode = #tpu.pipeline_mode<synchronous>, transform_indices = @transform_2, window_bounds = array<i64: 1, 32>}, {pipeline_mode = #tpu.pipeline_mode<synchronous>, transform_indices = @transform_3, window_bounds = array<i64: 32, 32>}, {pipeline_mode = #tpu.pipeline_mode<synchronous>, transform_indices = @transform_4, window_bounds = array<i64: 1, 32>}, {transform_indices = @transform_5, window_bounds = array<i64: 128, 128>}, {transform_indices = @transform_6, window_bounds = array<i64: 128, 1>}]} {
    %c0_i32 = arith.constant 0 : i32
    %0 = arith.cmpi eq, %arg1, %c0_i32 : i32
    %1 = arith.extui %0 : i1 to i32
    %c0_i32_0 = arith.constant 0 : i32
    %2 = arith.cmpi ne, %1, %c0_i32_0 : i32
    scf.if %2 {
      %c0_11 = arith.constant 0 : index
      %c0_12 = arith.constant 0 : index
      %23 = vector.load %arg2[%c0_11, %c0_12] : memref<256x16xf32, #tpu.memory_space<vmem>>, vector<256x16xf32>
      %c0_13 = arith.constant 0 : index
      %c0_14 = arith.constant 0 : index
      %24 = vector.load %arg3[%c0_13, %c0_14] : memref<16x32xf32, #tpu.memory_space<vmem>>, vector<16x32xf32>
      %cst_15 = arith.constant dense<0.000000e+00> : vector<256x32xf32>
      %25 = tpu.matmul %23, %24, %cst_15 {dimension_numbers = #tpu.dot_dimension_numbers<[1], [0], [0], [1], [0, 0, 1, 1], [], []>} : vector<256x16xf32>, vector<16x32xf32>, vector<256x32xf32> -> vector<256x32xf32>
      %c0_16 = arith.constant 0 : index
      %c0_17 = arith.constant 0 : index
      %26 = vector.load %arg4[%c0_16, %c0_17] : memref<1x32xf32, #tpu.memory_space<vmem>>, vector<1x32xf32>
      %27 = vector.broadcast %26 : vector<1x32xf32> to vector<256x32xf32>
      %28 = arith.addf %25, %27 : vector<256x32xf32>
      %cst_18 = arith.constant 0.000000e+00 : f32
      %29 = vector.broadcast %cst_18 : f32 to vector<256x32xf32>
      %30 = arith.maximumf %28, %29 : vector<256x32xf32>
      %c0_19 = arith.constant 0 : index
      %c0_20 = arith.constant 0 : index
      %31 = vector.load %arg5[%c0_19, %c0_20] : memref<32x32xf32, #tpu.memory_space<vmem>>, vector<32x32xf32>
      %cst_21 = arith.constant dense<0.000000e+00> : vector<256x32xf32>
      %32 = tpu.matmul %30, %31, %cst_21 {dimension_numbers = #tpu.dot_dimension_numbers<[1], [0], [0], [1], [0, 0, 1, 1], [], []>} : vector<256x32xf32>, vector<32x32xf32>, vector<256x32xf32> -> vector<256x32xf32>
      %c0_22 = arith.constant 0 : index
      %c0_23 = arith.constant 0 : index
      %33 = vector.load %arg6[%c0_22, %c0_23] : memref<1x32xf32, #tpu.memory_space<vmem>>, vector<1x32xf32>
      %34 = vector.broadcast %33 : vector<1x32xf32> to vector<256x32xf32>
      %35 = arith.addf %32, %34 : vector<256x32xf32>
      %c0_24 = arith.constant 0 : index
      %c0_25 = arith.constant 0 : index
      %36 = vector.load %arg9[%c0_24, %c0_25] : memref<256x32xf32, #tpu.memory_space<vmem>>, vector<256x32xf32>
      tpu.vector_store %arg9[%c0_24, %c0_25], %35 {strides = array<i32>} : memref<256x32xf32, #tpu.memory_space<vmem>>, vector<256x32xf32>,
      %cst_26 = arith.constant 0.000000e+00 : f32
      %37 = vector.broadcast %cst_26 : f32 to vector<128x1xf32>
      %c0_27 = arith.constant 0 : index
      %c0_28 = arith.constant 0 : index
      %38 = vector.load %arg8[%c0_27, %c0_28] : memref<128x1xf32, #tpu.memory_space<vmem>>, vector<128x1xf32>
      tpu.vector_store %arg8[%c0_27, %c0_28], %37 {strides = array<i32>} : memref<128x1xf32, #tpu.memory_space<vmem>>, vector<128x1xf32>,
    } else {
    }
    %c128_i32 = arith.constant 128 : i32
    %3 = arith.muli %arg0, %c128_i32 : i32
    %4 = tpu.assume_multiple %3, 128 : i32
    %c128_i32_1 = arith.constant 128 : i32
    %5 = arith.muli %arg1, %c128_i32_1 : i32
    %6 = tpu.assume_multiple %5, 128 : i32
    %7 = arith.index_cast %4 : i32 to index
    %c0 = arith.constant 0 : index
    %8 = vector.load %arg9[%7, %c0] : memref<256x32xf32, #tpu.memory_space<vmem>>, vector<128x32xf32>
    %9 = arith.index_cast %6 : i32 to index
    %c0_2 = arith.constant 0 : index
    %10 = vector.load %arg9[%9, %c0_2] : memref<256x32xf32, #tpu.memory_space<vmem>>, vector<128x32xf32>
    %cst = arith.constant dense<0.000000e+00> : vector<128x128xf32>
    %11 = tpu.matmul %8, %10, %cst {dimension_numbers = #tpu.dot_dimension_numbers<[1], [1], [0], [0], [0, 0, 1, 0], [], []>} : vector<128x32xf32>, vector<128x32xf32>, vector<128x128xf32> -> vector<128x128xf32>
    %12 = arith.negf %11 : vector<128x128xf32>
    %13 = math.exp %12 : vector<128x128xf32>
    %cst_3 = arith.constant 1.000000e+00 : f32
    %14 = vector.broadcast %cst_3 : f32 to vector<128x128xf32>
    %15 = arith.addf %14, %13 : vector<128x128xf32>
    %16 = arith.divf %14, %15 : vector<128x128xf32>
    %c0_4 = arith.constant 0 : index
    %c0_5 = arith.constant 0 : index
    %17 = vector.load %arg7[%c0_4, %c0_5] : memref<128x128xf32, #tpu.memory_space<vmem>>, vector<128x128xf32>
    tpu.vector_store %arg7[%c0_4, %c0_5], %16 {strides = array<i32>} : memref<128x128xf32, #tpu.memory_space<vmem>>, vector<128x128xf32>,
    %c0_6 = arith.constant 0 : index
    %c0_7 = arith.constant 0 : index
    %18 = vector.load %arg8[%c0_6, %c0_7] : memref<128x1xf32, #tpu.memory_space<vmem>>, vector<128x1xf32>
    %cst_8 = arith.constant dense<0.000000e+00> : vector<128xf32>
    %19 = vector.multi_reduction <add>, %16, %cst_8 [1] : vector<128x128xf32> to vector<128xf32>
    %20 = vector.shape_cast %19 : vector<128xf32> to vector<128x1xf32>
    %21 = arith.addf %18, %20 : vector<128x1xf32>
    %c0_9 = arith.constant 0 : index
    %c0_10 = arith.constant 0 : index
    %22 = vector.load %arg8[%c0_9, %c0_10] : memref<128x1xf32, #tpu.memory_space<vmem>>, vector<128x1xf32>
    tpu.vector_store %arg8[%c0_9, %c0_10], %21 {strides = array<i32>} : memref<128x1xf32, #tpu.memory_space<vmem>>, vector<128x1xf32>,
    return
  }
  func.func @transform_0(%arg0: i32, %arg1: i32) -> (i32, i32) {
    %c0_i32 = arith.constant 0 : i32
    %c0_i32_0 = arith.constant 0 : i32
    %c0_i32_1 = arith.constant 0 : i32
    return %c0_i32, %c0_i32_0 : i32, i32
  }
  func.func @transform_1(%arg0: i32, %arg1: i32) -> (i32, i32) {
    %c0_i32 = arith.constant 0 : i32
    %c0_i32_0 = arith.constant 0 : i32
    %c0_i32_1 = arith.constant 0 : i32
    return %c0_i32, %c0_i32_0 : i32, i32
  }
  func.func @transform_2(%arg0: i32, %arg1: i32) -> (i32, i32) {
    %c0_i32 = arith.constant 0 : i32
    %c0_i32_0 = arith.constant 0 : i32
    %c0_i32_1 = arith.constant 0 : i32
    return %c0_i32, %c0_i32_0 : i32, i32
  }
  func.func @transform_3(%arg0: i32, %arg1: i32) -> (i32, i32) {
    %c0_i32 = arith.constant 0 : i32
    %c0_i32_0 = arith.constant 0 : i32
    %c0_i32_1 = arith.constant 0 : i32
    return %c0_i32, %c0_i32_0 : i32, i32
  }
  func.func @transform_4(%arg0: i32, %arg1: i32) -> (i32, i32) {
    %c0_i32 = arith.constant 0 : i32
    %c0_i32_0 = arith.constant 0 : i32
    %c0_i32_1 = arith.constant 0 : i32
    return %c0_i32, %c0_i32_0 : i32, i32
  }
  func.func @transform_5(%arg0: i32, %arg1: i32) -> (i32, i32) {
    %c0_i32 = arith.constant 0 : i32
    return %arg0, %arg1 : i32, i32
  }
  func.func @transform_6(%arg0: i32, %arg1: i32) -> (i32, i32) {
    %c0_i32 = arith.constant 0 : i32
    %c0_i32_0 = arith.constant 0 : i32
    return %arg0, %c0_i32 : i32, i32
  }
}

</mosaic_0001>

<llo_original>
// kernel: net3_forward.3
$region0: #{net3_forward.3}
  #allocation0 [shape = 'u32[]', space=smem, size = 0x4, offset = 0x4, fixed_abs, tag = 'smem constant byte address 0x4 - core index']
  #allocation1 [shape = 'u32[144,128]{1,0:T(1,128)}', space=vmem, size = 0x12000, scoped, tag = 'internal scratch']
  #allocation2 [shape = 'f32[1,1]{1,0:T(1,128)S(6)}', space=smem, size = 0x200, scoped, tag = 'scoped memory for net3_forward.3']
  %s0 = inlined_call_operand.vmem [shape: f32[256,16], index: 0, kind: input, shape index: {}]
  %s1 = inlined_call_operand.vmem [shape: f32[256,1], index: 1, kind: input, shape index: {}]
  %s2 = inlined_call_operand.vmem [shape: f32[16,32], index: 2, kind: input, shape index: {}]
  %s3 = inlined_call_operand.vmem [shape: f32[1,32], index: 3, kind: input, shape index: {}]
  %s4 = inlined_call_operand.vmem [shape: f32[1,32], index: 4, kind: input, shape index: {}]
  %s5 = inlined_call_operand.<no memory space> [shape: f32[1,1], index: 5, kind: input, shape index: {}]
  %s6 = inlined_call_operand.vmem [shape: f32[256,1], index: 6, kind: output, shape index: {}]
  %s7 = sld [smem:[#allocation0]]
  $region34: #{net3_forward.3} parent=0
    _
  %s9 = ssub.s32 1, %s7
  %s10 = scalar_select 0, %s9, %s7
  %11 = sst [smem:[#allocation2]] %s5
  // Predicated region
  $region2: #{net3_forward.3} parent=0 // pred_check
    _
  $region3: #{net3_forward.3} parent=0 // pred_check_branch
    %13 = sbr.rel (0) target = $region5
  $region4: #{net3_forward.3} parent=0 // pred_region
    _
  $region5: #{net3_forward.3} parent=0 // pred_fallthru
    _
  // Predicated region
  $region6: #{net3_forward.3} parent=0 // pred_check
    _
  $region7: #{net3_forward.3} parent=0 // pred_check_branch
    %15 = sbr.rel (0) target = $region9
  $region8: #{net3_forward.3} parent=0 // pred_region
    _
  $region9: #{net3_forward.3} parent=0 // pred_fallthru
    _
  // Predicated region
  $region10: #{net3_forward.3} parent=0 // pred_check
    _
  $region11: #{net3_forward.3} parent=0 // pred_check_branch
    %17 = sbr.rel (0) target = $region13
  $region12: #{net3_forward.3} parent=0 // pred_region
    _
  $region13: #{net3_forward.3} parent=0 // pred_fallthru
    _
  // Predicated region
  $region14: #{net3_forward.3} parent=0 // pred_check
    _
  $region15: #{net3_forward.3} parent=0 // pred_check_branch
    %19 = sbr.rel (0) target = $region17
  $region16: #{net3_forward.3} parent=0 // pred_region
    _
  $region17: #{net3_forward.3} parent=0 // pred_fallthru
    _
  // Predicated region
  $region18: #{net3_forward.3} parent=0 // pred_check
    _
  $region19: #{net3_forward.3} parent=0 // pred_check_branch
    %21 = sbr.rel (0) target = $region21
  $region20: #{net3_forward.3} parent=0 // pred_region
    _
  $region21: #{net3_forward.3} parent=0 // pred_fallthru
    _
  // Predicated region
  $region22: #{net3_forward.3} parent=0 // pred_check
    _
  $region23: #{net3_forward.3} parent=0 // pred_check_branch
    %23 = sbr.rel (0) target = $region25
  $region24: #{net3_forward.3} parent=0 // pred_region
    _
  $region25: #{net3_forward.3} parent=0 // pred_fallthru
    _
  %v24 = vld [vmem:[%s0] sm:$0xff]
  %v25 = vld [vmem:[%s0 + $0x8] sm:$0xff]
  %v26 = vld [vmem:[%s0 + $0x10] sm:$0xff]
  %v27 = vld [vmem:[%s0 + $0x18] sm:$0xff]
  %v28 = vld [vmem:[%s0 + $0x20] sm:$0xff]
  %v29 = vld [vmem:[%s0 + $0x28] sm:$0xff]
  %v30 = vld [vmem:[%s0 + $0x30] sm:$0xff]
  %v31 = vld [vmem:[%s0 + $0x38] sm:$0xff]
  %v32 = vld [vmem:[%s0 + $0x40] sm:$0xff]
  %v33 = vld [vmem:[%s0 + $0x48] sm:$0xff]
  %v34 = vld [vmem:[%s0 + $0x50] sm:$0xff]
  %v35 = vld [vmem:[%s0 + $0x58] sm:$0xff]
  %v36 = vld [vmem:[%s0 + $0x60] sm:$0xff]
  %v37 = vld [vmem:[%s0 + $0x68] sm:$0xff]
  %v38 = vld [vmem:[%s0 + $0x70] sm:$0xff]
  %v39 = vld [vmem:[%s0 + $0x78] sm:$0xff]
  %v40 = vld [vmem:[%s0 + $0x80] sm:$0xff]
  %v41 = vld [vmem:[%s0 + $0x88] sm:$0xff]
  %v42 = vld [vmem:[%s0 + $0x90] sm:$0xff]
  %v43 = vld [vmem:[%s0 + $0x98] sm:$0xff]
  %v44 = vld [vmem:[%s0 + $0xa0] sm:$0xff]
  %v45 = vld [vmem:[%s0 + $0xa8] sm:$0xff]
  %v46 = vld [vmem:[%s0 + $0xb0] sm:$0xff]
  %v47 = vld [vmem:[%s0 + $0xb8] sm:$0xff]
  %v48 = vld [vmem:[%s0 + $0xc0] sm:$0xff]
  %v49 = vld [vmem:[%s0 + $0xc8] sm:$0xff]
  %v50 = vld [vmem:[%s0 + $0xd0] sm:$0xff]
  %v51 = vld [vmem:[%s0 + $0xd8] sm:$0xff]
  %v52 = vld [vmem:[%s0 + $0xe0] sm:$0xff]
  %v53 = vld [vmem:[%s0 + $0xe8] sm:$0xff]
  %v54 = vld [vmem:[%s0 + $0xf0] sm:$0xff]
  %v55 = vld [vmem:[%s0 + $0xf8] sm:$0xff]
  %v56 = vld [vmem:[%s2] sm:$0xff]
  %v57 = vld [vmem:[%s2 + $0x8] sm:$0xff]
  %v58 = vld [vmem:[%s3] sm:$0x1]
  %v60 = vlaneseq
  %v61 = vshrl.u32 %v60, 7
  %v62 = vsub.s32 0, %v61
  %v63 = vrot.slane %v58, %v62
  %vm65 = vcmask 130048
  %v67 = vsel %vm65, %v24, 0
  %v70 = vsel %vm65, %v25, 0
  %v73 = vsel %vm65, %v26, 0
  %v76 = vsel %vm65, %v27, 0
  %v79 = vsel %vm65, %v28, 0
  %v82 = vsel %vm65, %v29, 0
  %v85 = vsel %vm65, %v30, 0
  %v88 = vsel %vm65, %v31, 0
  %v91 = vsel %vm65, %v32, 0
  %v94 = vsel %vm65, %v33, 0
  %v97 = vsel %vm65, %v34, 0
  %v100 = vsel %vm65, %v35, 0
  %v103 = vsel %vm65, %v36, 0
  %v106 = vsel %vm65, %v37, 0
  %v109 = vsel %vm65, %v38, 0
  %v112 = vsel %vm65, %v39, 0
  %v115 = vsel %vm65, %v40, 0
  %v118 = vsel %vm65, %v41, 0
  %v121 = vsel %vm65, %v42, 0
  %v124 = vsel %vm65, %v43, 0
  %v127 = vsel %vm65, %v44, 0
  %v130 = vsel %vm65, %v45, 0
  %v133 = vsel %vm65, %v46, 0
  %v136 = vsel %vm65, %v47, 0
  %v139 = vsel %vm65, %v48, 0
  %v142 = vsel %vm65, %v49, 0
  %v145 = vsel %vm65, %v50, 0
  %v148 = vsel %vm65, %v51, 0
  %v151 = vsel %vm65, %v52, 0
  %v154 = vsel %vm65, %v53, 0
  %v157 = vsel %vm65, %v54, 0
  %v160 = vsel %vm65, %v55, 0
  %162 = vmatprep.subr.mxu0 0.0
  %163 = vmatpush1.msra.mxu0 0.0
  %164 = vmatprep.subr.mxu0 0.0
  %165 = vmatpush1.msra.mxu0 0.0
  %166 = vmatprep.subr.mxu0 0.0
  %167 = vmatpush1.msra.mxu0 0.0
  %168 = vmatprep.subr.mxu0 0.0
  %169 = vmatpush1.msra.mxu0 0.0
  %170 = vmatprep.subr.mxu0 0.0
  %171 = vmatpush1.msra.mxu0 0.0
  %172 = vmatprep.subr.mxu0 0.0
  %173 = vmatpush1.msra.mxu0 0.0
  %174 = vmatprep.subr.mxu0 0.0
  %175 = vmatpush1.msra.mxu0 0.0
  %176 = vmatprep.subr.mxu0 0.0
  %177 = vmatpush1.msra.mxu0 0.0
  %178 = vmatprep.subr.mxu0 0.0
  %179 = vmatpush1.msra.mxu0 0.0
  %180 = vmatprep.subr.mxu0 0.0
  %181 = vmatpush1.msra.mxu0 0.0
  %182 = vmatprep.subr.mxu0 0.0
  %183 = vmatpush1.msra.mxu0 0.0
  %184 = vmatprep.subr.mxu0 0.0
  %185 = vmatpush1.msra.mxu0 0.0
  %186 = vmatprep.subr.mxu0 0.0
  %187 = vmatpush1.msra.mxu0 0.0
  %188 = vmatprep.subr.mxu0 0.0
  %189 = vmatpush1.msra.mxu0 0.0
  %190 = vmatprep.subr.mxu0 0.0
  %191 = vmatpush1.msra.mxu0 %v57
  %192 = vmatprep.subr.mxu0 0.0
  %193 = vmatpush1.msra.mxu0 %v56
  %194 = vmatprep.subr.mxu0 0.0
  %195 = vmatpush2.msra.mxu0 0.0
  %196 = vmatprep.subr.mxu0 0.0
  %197 = vmatpush2.msra.mxu0 0.0
  %198 = vmatprep.subr.mxu0 0.0
  %199 = vmatpush2.msra.mxu0 0.0
  %200 = vmatprep.subr.mxu0 0.0
  %201 = vmatpush2.msra.mxu0 0.0
  %202 = vmatprep.subr.mxu0 0.0
  %203 = vmatpush2.msra.mxu0 0.0
  %204 = vmatprep.subr.mxu0 0.0
  %205 = vmatpush2.msra.mxu0 0.0
  %206 = vmatprep.subr.mxu0 0.0
  %207 = vmatpush2.msra.mxu0 0.0
  %208 = vmatprep.subr.mxu0 0.0
  %209 = vmatpush2.msra.mxu0 0.0
  %210 = vmatprep.subr.mxu0 0.0
  %211 = vmatpush2.msra.mxu0 0.0
  %212 = vmatprep.subr.mxu0 0.0
  %213 = vmatpush2.msra.mxu0 0.0
  %214 = vmatprep.subr.mxu0 0.0
  %215 = vmatpush2.msra.mxu0 0.0
  %216 = vmatprep.subr.mxu0 0.0
  %217 = vmatpush2.msra.mxu0 0.0
  %218 = vmatprep.subr.mxu0 0.0
  %219 = vmatpush2.msra.mxu0 0.0
  %220 = vmatprep.subr.mxu0 0.0
  %221 = vmatpush2.msra.mxu0 0.0
  %222 = vmatprep.subr.mxu0 0.0
  %223 = vmatpush2.msra.mxu0 0.0
  %224 = vmatprep.subr.mxu0 0.0
  %225 = vmatpush2.msra.mxu0 0.0
  %226 = vmatprep.mubr.f32.mxu0 0.0
  %227 = vmatmul.mubr.f32.gmra.mxu0 %v67
  %v228 = vpop.f32.mrf.mxu0
  %v229 = vadd.f32 %v63, %v228
  %v230 = vpop.f32.mrf.mxu0
  %231 = vmatprep.mubr.f32.mxu0 0.0
  %232 = vmatmul.mubr.f32.gmra.mxu0 %v70
  %v233 = vpop.f32.mrf.mxu0
  %v234 = vadd.f32 %v63, %v233
  %v235 = vpop.f32.mrf.mxu0
  %236 = vmatprep.mubr.f32.mxu0 0.0
  %237 = vmatmul.mubr.f32.gmra.mxu0 %v73
  %v238 = vpop.f32.mrf.mxu0
  %v239 = vadd.f32 %v63, %v238
  %v240 = vpop.f32.mrf.mxu0
  %241 = vmatprep.mubr.f32.mxu0 0.0
  %242 = vmatmul.mubr.f32.gmra.mxu0 %v76
  %v243 = vpop.f32.mrf.mxu0
  %v244 = vadd.f32 %v63, %v243
  %v245 = vpop.f32.mrf.mxu0
  %246 = vmatprep.mubr.f32.mxu0 0.0
  %247 = vmatmul.mubr.f32.gmra.mxu0 %v79
  %v248 = vpop.f32.mrf.mxu0
  %v249 = vadd.f32 %v63, %v248
  %v250 = vpop.f32.mrf.mxu0
  %251 = vmatprep.mubr.f32.mxu0 0.0
  %252 = vmatmul.mubr.f32.gmra.mxu0 %v82
  %v253 = vpop.f32.mrf.mxu0
  %v254 = vadd.f32 %v63, %v253
  %v255 = vpop.f32.mrf.mxu0
  %256 = vmatprep.mubr.f32.mxu0 0.0
  %257 = vmatmul.mubr.f32.gmra.mxu0 %v85
  %v258 = vpop.f32.mrf.mxu0
  %v259 = vadd.f32 %v63, %v258
  %v260 = vpop.f32.mrf.mxu0
  %261 = vmatprep.mubr.f32.mxu0 0.0
  %262 = vmatmul.mubr.f32.gmra.mxu0 %v88
  %v263 = vpop.f32.mrf.mxu0
  %v264 = vadd.f32 %v63, %v263
  %v265 = vpop.f32.mrf.mxu0
  %266 = vmatprep.mubr.f32.mxu0 0.0
  %267 = vmatmul.mubr.f32.gmra.mxu0 %v91
  %v268 = vpop.f32.mrf.mxu0
  %v269 = vadd.f32 %v63, %v268
  %v270 = vpop.f32.mrf.mxu0
  %271 = vmatprep.mubr.f32.mxu0 0.0
  %272 = vmatmul.mubr.f32.gmra.mxu0 %v94
  %v273 = vpop.f32.mrf.mxu0
  %v274 = vadd.f32 %v63, %v273
  %v275 = vpop.f32.mrf.mxu0
  %276 = vmatprep.mubr.f32.mxu0 0.0
  %277 = vmatmul.mubr.f32.gmra.mxu0 %v97
  %v278 = vpop.f32.mrf.mxu0
  %v279 = vadd.f32 %v63, %v278
  %v280 = vpop.f32.mrf.mxu0
  %281 = vmatprep.mubr.f32.mxu0 0.0
  %282 = vmatmul.mubr.f32.gmra.mxu0 %v100
  %v283 = vpop.f32.mrf.mxu0
  %v284 = vadd.f32 %v63, %v283
  %v285 = vpop.f32.mrf.mxu0
  %286 = vmatprep.mubr.f32.mxu0 0.0
  %287 = vmatmul.mubr.f32.gmra.mxu0 %v103
  %v288 = vpop.f32.mrf.mxu0
  %v289 = vadd.f32 %v63, %v288
  %v290 = vpop.f32.mrf.mxu0
  %291 = vmatprep.mubr.f32.mxu0 0.0
  %292 = vmatmul.mubr.f32.gmra.mxu0 %v106
  %v293 = vpop.f32.mrf.mxu0
  %v294 = vadd.f32 %v63, %v293
  %v295 = vpop.f32.mrf.mxu0
  %296 = vmatprep.mubr.f32.mxu0 0.0
  %297 = vmatmul.mubr.f32.gmra.mxu0 %v109
  %v298 = vpop.f32.mrf.mxu0
  %v299 = vadd.f32 %v63, %v298
  %v300 = vpop.f32.mrf.mxu0
  %301 = vmatprep.mubr.f32.mxu0 0.0
  %302 = vmatmul.mubr.f32.gmra.mxu0 %v112
  %v303 = vpop.f32.mrf.mxu0
  %v304 = vadd.f32 %v63, %v303
  %v305 = vpop.f32.mrf.mxu0
  %306 = vmatprep.mubr.f32.mxu0 0.0
  %307 = vmatmul.mubr.f32.gmra.mxu0 %v115
  %v308 = vpop.f32.mrf.mxu0
  %v309 = vadd.f32 %v63, %v308
  %v310 = vpop.f32.mrf.mxu0
  %311 = vmatprep.mubr.f32.mxu0 0.0
  %312 = vmatmul.mubr.f32.gmra.mxu0 %v118
  %v313 = vpop.f32.mrf.mxu0
  %v314 = vadd.f32 %v63, %v313
  %v315 = vpop.f32.mrf.mxu0
  %316 = vmatprep.mubr.f32.mxu0 0.0
  %317 = vmatmul.mubr.f32.gmra.mxu0 %v121
  %v318 = vpop.f32.mrf.mxu0
  %v319 = vadd.f32 %v63, %v318
  %v320 = vpop.f32.mrf.mxu0
  %321 = vmatprep.mubr.f32.mxu0 0.0
  %322 = vmatmul.mubr.f32.gmra.mxu0 %v124
  %v323 = vpop.f32.mrf.mxu0
  %v324 = vadd.f32 %v63, %v323
  %v325 = vpop.f32.mrf.mxu0
  %326 = vmatprep.mubr.f32.mxu0 0.0
  %327 = vmatmul.mubr.f32.gmra.mxu0 %v127
  %v328 = vpop.f32.mrf.mxu0
  %v329 = vadd.f32 %v63, %v328
  %v330 = vpop.f32.mrf.mxu0
  %331 = vmatprep.mubr.f32.mxu0 0.0
  %332 = vmatmul.mubr.f32.gmra.mxu0 %v130
  %v333 = vpop.f32.mrf.mxu0
  %v334 = vadd.f32 %v63, %v333
  %v335 = vpop.f32.mrf.mxu0
  %336 = vmatprep.mubr.f32.mxu0 0.0
  %337 = vmatmul.mubr.f32.gmra.mxu0 %v133
  %v338 = vpop.f32.mrf.mxu0
  %v339 = vadd.f32 %v63, %v338
  %v340 = vpop.f32.mrf.mxu0
  %341 = vmatprep.mubr.f32.mxu0 0.0
  %342 = vmatmul.mubr.f32.gmra.mxu0 %v136
  %v343 = vpop.f32.mrf.mxu0
  %v344 = vadd.f32 %v63, %v343
  %v345 = vpop.f32.mrf.mxu0
  %346 = vmatprep.mubr.f32.mxu0 0.0
  %347 = vmatmul.mubr.f32.gmra.mxu0 %v139
  %v348 = vpop.f32.mrf.mxu0
  %v349 = vadd.f32 %v63, %v348
  %v350 = vpop.f32.mrf.mxu0
  %351 = vmatprep.mubr.f32.mxu0 0.0
  %352 = vmatmul.mubr.f32.gmra.mxu0 %v142
  %v353 = vpop.f32.mrf.mxu0
  %v354 = vadd.f32 %v63, %v353
  %v355 = vpop.f32.mrf.mxu0
  %356 = vmatprep.mubr.f32.mxu0 0.0
  %357 = vmatmul.mubr.f32.gmra.mxu0 %v145
  %v358 = vpop.f32.mrf.mxu0
  %v359 = vadd.f32 %v63, %v358
  %v360 = vpop.f32.mrf.mxu0
  %361 = vmatprep.mubr.f32.mxu0 0.0
  %362 = vmatmul.mubr.f32.gmra.mxu0 %v148
  %v363 = vpop.f32.mrf.mxu0
  %v364 = vadd.f32 %v63, %v363
  %v365 = vpop.f32.mrf.mxu0
  %366 = vmatprep.mubr.f32.mxu0 0.0
  %367 = vmatmul.mubr.f32.gmra.mxu0 %v151
  %v368 = vpop.f32.mrf.mxu0
  %v369 = vadd.f32 %v63, %v368
  %v370 = vpop.f32.mrf.mxu0
  %371 = vmatprep.mubr.f32.mxu0 0.0
  %372 = vmatmul.mubr.f32.gmra.mxu0 %v154
  %v373 = vpop.f32.mrf.mxu0
  %v374 = vadd.f32 %v63, %v373
  %v375 = vpop.f32.mrf.mxu0
  %376 = vmatprep.mubr.f32.mxu0 0.0
  %377 = vmatmul.mubr.f32.gmra.mxu0 %v157
  %v378 = vpop.f32.mrf.mxu0
  %v379 = vadd.f32 %v63, %v378
  %v380 = vpop.f32.mrf.mxu0
  %381 = vmatprep.mubr.f32.mxu0 0.0
  %382 = vmatmul.mubr.f32.gmra.mxu0 %v160
  %v383 = vpop.f32.mrf.mxu0
  %v384 = vadd.f32 %v63, %v383
  %v385 = vpop.f32.mrf.mxu0
  %386 = vdwg.mxu0
  %v387 = vmax.f32 %v229, 0.0
  %v388 = vmax.f32 %v234, 0.0
  %v389 = vmax.f32 %v239, 0.0
  %v390 = vmax.f32 %v244, 0.0
  %v391 = vmax.f32 %v249, 0.0
  %v392 = vmax.f32 %v254, 0.0
  %v393 = vmax.f32 %v259, 0.0
  %v394 = vmax.f32 %v264, 0.0
  %v395 = vmax.f32 %v269, 0.0
  %v396 = vmax.f32 %v274, 0.0
  %v397 = vmax.f32 %v279, 0.0
  %v398 = vmax.f32 %v284, 0.0
  %v399 = vmax.f32 %v289, 0.0
  %v400 = vmax.f32 %v294, 0.0
  %v401 = vmax.f32 %v299, 0.0
  %v402 = vmax.f32 %v304, 0.0
  %v403 = vmax.f32 %v309, 0.0
  %v404 = vmax.f32 %v314, 0.0
  %v405 = vmax.f32 %v319, 0.0
  %v406 = vmax.f32 %v324, 0.0
  %v407 = vmax.f32 %v329, 0.0
  %v408 = vmax.f32 %v334, 0.0
  %v409 = vmax.f32 %v339, 0.0
  %v410 = vmax.f32 %v344, 0.0
  %v411 = vmax.f32 %v349, 0.0
  %v412 = vmax.f32 %v354, 0.0
  %v413 = vmax.f32 %v359, 0.0
  %v414 = vmax.f32 %v364, 0.0
  %v415 = vmax.f32 %v369, 0.0
  %v416 = vmax.f32 %v374, 0.0
  %v417 = vmax.f32 %v379, 0.0
  %v418 = vmax.f32 %v384, 0.0
  %v419 = vld [vmem:[%s4] sm:$0x1]
  %v421 = vlaneseq
  %v422 = vshrl.u32 %v421, 7
  %v423 = vsub.s32 0, %v422
  %v424 = vrot.slane %v419, %v423
  %v426 = vmul.f32 %v387, %v424
  %v427 = vmul.f32 %v388, %v424
  %v428 = vmul.f32 %v389, %v424
  %v429 = vmul.f32 %v390, %v424
  %v430 = vmul.f32 %v391, %v424
  %v431 = vmul.f32 %v392, %v424
  %v432 = vmul.f32 %v393, %v424
  %v433 = vmul.f32 %v394, %v424
  %v434 = vmul.f32 %v395, %v424
  %v435 = vmul.f32 %v396, %v424
  %v436 = vmul.f32 %v397, %v424
  %v437 = vmul.f32 %v398, %v424
  %v438 = vmul.f32 %v399, %v424
  %v439 = vmul.f32 %v400, %v424
  %v440 = vmul.f32 %v401, %v424
  %v441 = vmul.f32 %v402, %v424
  %v442 = vmul.f32 %v403, %v424
  %v443 = vmul.f32 %v404, %v424
  %v444 = vmul.f32 %v405, %v424
  %v445 = vmul.f32 %v406, %v424
  %v446 = vmul.f32 %v407, %v424
  %v447 = vmul.f32 %v408, %v424
  %v448 = vmul.f32 %v409, %v424
  %v449 = vmul.f32 %v410, %v424
  %v450 = vmul.f32 %v411, %v424
  %v451 = vmul.f32 %v412, %v424
  %v452 = vmul.f32 %v413, %v424
  %v453 = vmul.f32 %v414, %v424
  %v454 = vmul.f32 %v415, %v424
  %v455 = vmul.f32 %v416, %v424
  %v456 = vmul.f32 %v417, %v424
  %v457 = vmul.f32 %v418, %v424
  %vm458 = vcmask 261120
  %v459 = vsel %vm458, %v426, 0.0
  %460 = vadd.xlane.f32.xlu0 %v459
  %v461 = vpop.xlane.xlu0 %460
  %v462 = vsel %vm458, %v427, 0.0
  %463 = vadd.xlane.f32.xlu0 %v462
  %v464 = vpop.xlane.xlu0 %463
  %v465 = vsel %vm458, %v428, 0.0
  %466 = vadd.xlane.f32.xlu0 %v465
  %v467 = vpop.xlane.xlu0 %466
  %v468 = vsel %vm458, %v429, 0.0
  %469 = vadd.xlane.f32.xlu0 %v468
  %v470 = vpop.xlane.xlu0 %469
  %v471 = vsel %vm458, %v430, 0.0
  %472 = vadd.xlane.f32.xlu0 %v471
  %v473 = vpop.xlane.xlu0 %472
  %v474 = vsel %vm458, %v431, 0.0
  %475 = vadd.xlane.f32.xlu0 %v474
  %v476 = vpop.xlane.xlu0 %475
  %v477 = vsel %vm458, %v432, 0.0
  %478 = vadd.xlane.f32.xlu0 %v477
  %v479 = vpop.xlane.xlu0 %478
  %v480 = vsel %vm458, %v433, 0.0
  %481 = vadd.xlane.f32.xlu0 %v480
  %v482 = vpop.xlane.xlu0 %481
  %v483 = vsel %vm458, %v434, 0.0
  %484 = vadd.xlane.f32.xlu0 %v483
  %v485 = vpop.xlane.xlu0 %484
  %v486 = vsel %vm458, %v435, 0.0
  %487 = vadd.xlane.f32.xlu0 %v486
  %v488 = vpop.xlane.xlu0 %487
  %v489 = vsel %vm458, %v436, 0.0
  %490 = vadd.xlane.f32.xlu0 %v489
  %v491 = vpop.xlane.xlu0 %490
  %v492 = vsel %vm458, %v437, 0.0
  %493 = vadd.xlane.f32.xlu0 %v492
  %v494 = vpop.xlane.xlu0 %493
  %v495 = vsel %vm458, %v438, 0.0
  %496 = vadd.xlane.f32.xlu0 %v495
  %v497 = vpop.xlane.xlu0 %496
  %v498 = vsel %vm458, %v439, 0.0
  %499 = vadd.xlane.f32.xlu0 %v498
  %v500 = vpop.xlane.xlu0 %499
  %v501 = vsel %vm458, %v440, 0.0
  %502 = vadd.xlane.f32.xlu0 %v501
  %v503 = vpop.xlane.xlu0 %502
  %v504 = vsel %vm458, %v441, 0.0
  %505 = vadd.xlane.f32.xlu0 %v504
  %v506 = vpop.xlane.xlu0 %505
  %v507 = vsel %vm458, %v442, 0.0
  %508 = vadd.xlane.f32.xlu0 %v507
  %v509 = vpop.xlane.xlu0 %508
  %v510 = vsel %vm458, %v443, 0.0
  %511 = vadd.xlane.f32.xlu0 %v510
  %v512 = vpop.xlane.xlu0 %511
  %v513 = vsel %vm458, %v444, 0.0
  %514 = vadd.xlane.f32.xlu0 %v513
  %v515 = vpop.xlane.xlu0 %514
  %v516 = vsel %vm458, %v445, 0.0
  %517 = vadd.xlane.f32.xlu0 %v516
  %v518 = vpop.xlane.xlu0 %517
  %v519 = vsel %vm458, %v446, 0.0
  %520 = vadd.xlane.f32.xlu0 %v519
  %v521 = vpop.xlane.xlu0 %520
  %v522 = vsel %vm458, %v447, 0.0
  %523 = vadd.xlane.f32.xlu0 %v522
  %v524 = vpop.xlane.xlu0 %523
  %v525 = vsel %vm458, %v448, 0.0
  %526 = vadd.xlane.f32.xlu0 %v525
  %v527 = vpop.xlane.xlu0 %526
  %v528 = vsel %vm458, %v449, 0.0
  %529 = vadd.xlane.f32.xlu0 %v528
  %v530 = vpop.xlane.xlu0 %529
  %v531 = vsel %vm458, %v450, 0.0
  %532 = vadd.xlane.f32.xlu0 %v531
  %v533 = vpop.xlane.xlu0 %532
  %v534 = vsel %vm458, %v451, 0.0
  %535 = vadd.xlane.f32.xlu0 %v534
  %v536 = vpop.xlane.xlu0 %535
  %v537 = vsel %vm458, %v452, 0.0
  %538 = vadd.xlane.f32.xlu0 %v537
  %v539 = vpop.xlane.xlu0 %538
  %v540 = vsel %vm458, %v453, 0.0
  %541 = vadd.xlane.f32.xlu0 %v540
  %v542 = vpop.xlane.xlu0 %541
  %v543 = vsel %vm458, %v454, 0.0
  %544 = vadd.xlane.f32.xlu0 %v543
  %v545 = vpop.xlane.xlu0 %544
  %v546 = vsel %vm458, %v455, 0.0
  %547 = vadd.xlane.f32.xlu0 %v546
  %v548 = vpop.xlane.xlu0 %547
  %v549 = vsel %vm458, %v456, 0.0
  %550 = vadd.xlane.f32.xlu0 %v549
  %v551 = vpop.xlane.xlu0 %550
  %v552 = vsel %vm458, %v457, 0.0
  %553 = vadd.xlane.f32.xlu0 %v552
  %v554 = vpop.xlane.xlu0 %553
  %s555 = sld [smem:[#allocation2]]
  %v556 = vstv %s555
  %v557 = vadd.f32 %v461, %v556
  %v558 = vadd.f32 %v464, %v556
  %v559 = vadd.f32 %v467, %v556
  %v560 = vadd.f32 %v470, %v556
  %v561 = vadd.f32 %v473, %v556
  %v562 = vadd.f32 %v476, %v556
  %v563 = vadd.f32 %v479, %v556
  %v564 = vadd.f32 %v482, %v556
  %v565 = vadd.f32 %v485, %v556
  %v566 = vadd.f32 %v488, %v556
  %v567 = vadd.f32 %v491, %v556
  %v568 = vadd.f32 %v494, %v556
  %v569 = vadd.f32 %v497, %v556
  %v570 = vadd.f32 %v500, %v556
  %v571 = vadd.f32 %v503, %v556
  %v572 = vadd.f32 %v506, %v556
  %v573 = vadd.f32 %v509, %v556
  %v574 = vadd.f32 %v512, %v556
  %v575 = vadd.f32 %v515, %v556
  %v576 = vadd.f32 %v518, %v556
  %v577 = vadd.f32 %v521, %v556
  %v578 = vadd.f32 %v524, %v556
  %v579 = vadd.f32 %v527, %v556
  %v580 = vadd.f32 %v530, %v556
  %v581 = vadd.f32 %v533, %v556
  %v582 = vadd.f32 %v536, %v556
  %v583 = vadd.f32 %v539, %v556
  %v584 = vadd.f32 %v542, %v556
  %v585 = vadd.f32 %v545, %v556
  %v586 = vadd.f32 %v548, %v556
  %v587 = vadd.f32 %v551, %v556
  %v588 = vadd.f32 %v554, %v556
  %v589 = vld [vmem:[%s1] sm:$0xff]
  %v590 = vld [vmem:[%s1 + $0x8] sm:$0xff]
  %v591 = vld [vmem:[%s1 + $0x10] sm:$0xff]
  %v592 = vld [vmem:[%s1 + $0x18] sm:$0xff]
  %v593 = vld [vmem:[%s1 + $0x20] sm:$0xff]
  %v594 = vld [vmem:[%s1 + $0x28] sm:$0xff]
  %v595 = vld [vmem:[%s1 + $0x30] sm:$0xff]
  %v596 = vld [vmem:[%s1 + $0x38] sm:$0xff]
  %v597 = vld [vmem:[%s1 + $0x40] sm:$0xff]
  %v598 = vld [vmem:[%s1 + $0x48] sm:$0xff]
  %v599 = vld [vmem:[%s1 + $0x50] sm:$0xff]
  %v600 = vld [vmem:[%s1 + $0x58] sm:$0xff]
  %v601 = vld [vmem:[%s1 + $0x60] sm:$0xff]
  %v602 = vld [vmem:[%s1 + $0x68] sm:$0xff]
  %v603 = vld [vmem:[%s1 + $0x70] sm:$0xff]
  %v604 = vld [vmem:[%s1 + $0x78] sm:$0xff]
  %v605 = vld [vmem:[%s1 + $0x80] sm:$0xff]
  %v606 = vld [vmem:[%s1 + $0x88] sm:$0xff]
  %v607 = vld [vmem:[%s1 + $0x90] sm:$0xff]
  %v608 = vld [vmem:[%s1 + $0x98] sm:$0xff]
  %v609 = vld [vmem:[%s1 + $0xa0] sm:$0xff]
  %v610 = vld [vmem:[%s1 + $0xa8] sm:$0xff]
  %v611 = vld [vmem:[%s1 + $0xb0] sm:$0xff]
  %v612 = vld [vmem:[%s1 + $0xb8] sm:$0xff]
  %v613 = vld [vmem:[%s1 + $0xc0] sm:$0xff]
  %v614 = vld [vmem:[%s1 + $0xc8] sm:$0xff]
  %v615 = vld [vmem:[%s1 + $0xd0] sm:$0xff]
  %v616 = vld [vmem:[%s1 + $0xd8] sm:$0xff]
  %v617 = vld [vmem:[%s1 + $0xe0] sm:$0xff]
  %v618 = vld [vmem:[%s1 + $0xe8] sm:$0xff]
  %v619 = vld [vmem:[%s1 + $0xf0] sm:$0xff]
  %v620 = vld [vmem:[%s1 + $0xf8] sm:$0xff]
  %v621 = vadd.f32 %v557, %v589
  %v622 = vadd.f32 %v558, %v590
  %v623 = vadd.f32 %v559, %v591
  %v624 = vadd.f32 %v560, %v592
  %v625 = vadd.f32 %v561, %v593
  %v626 = vadd.f32 %v562, %v594
  %v627 = vadd.f32 %v563, %v595
  %v628 = vadd.f32 %v564, %v596
  %v629 = vadd.f32 %v565, %v597
  %v630 = vadd.f32 %v566, %v598
  %v631 = vadd.f32 %v567, %v599
  %v632 = vadd.f32 %v568, %v600
  %v633 = vadd.f32 %v569, %v601
  %v634 = vadd.f32 %v570, %v602
  %v635 = vadd.f32 %v571, %v603
  %v636 = vadd.f32 %v572, %v604
  %v637 = vadd.f32 %v573, %v605
  %v638 = vadd.f32 %v574, %v606
  %v639 = vadd.f32 %v575, %v607
  %v640 = vadd.f32 %v576, %v608
  %v641 = vadd.f32 %v577, %v609
  %v642 = vadd.f32 %v578, %v610
  %v643 = vadd.f32 %v579, %v611
  %v644 = vadd.f32 %v580, %v612
  %v645 = vadd.f32 %v581, %v613
  %v646 = vadd.f32 %v582, %v614
  %v647 = vadd.f32 %v583, %v615
  %v648 = vadd.f32 %v584, %v616
  %v649 = vadd.f32 %v585, %v617
  %v650 = vadd.f32 %v586, %v618
  %v651 = vadd.f32 %v587, %v619
  %v652 = vadd.f32 %v588, %v620
  %vm653 = vcmask 7168
  %v654 = vsel %vm653, %v621, -inf
  %v655 = vsel %vm653, %v622, -inf
  %v656 = vsel %vm653, %v623, -inf
  %v657 = vsel %vm653, %v624, -inf
  %v658 = vsel %vm653, %v625, -inf
  %v659 = vmax.f32 %v654, %v658
  %v660 = vsel %vm653, %v626, -inf
  %v661 = vmax.f32 %v655, %v660
  %v662 = vsel %vm653, %v627, -inf
  %v663 = vmax.f32 %v656, %v662
  %v664 = vsel %vm653, %v628, -inf
  %v665 = vmax.f32 %v657, %v664
  %v666 = vsel %vm653, %v629, -inf
  %v667 = vmax.f32 %v659, %v666
  %v668 = vsel %vm653, %v630, -inf
  %v669 = vmax.f32 %v661, %v668
  %v670 = vsel %vm653, %v631, -inf
  %v671 = vmax.f32 %v663, %v670
  %v672 = vsel %vm653, %v632, -inf
  %v673 = vmax.f32 %v665, %v672
  %v674 = vsel %vm653, %v633, -inf
  %v675 = vmax.f32 %v667, %v674
  %v676 = vsel %vm653, %v634, -inf
  %v677 = vmax.f32 %v669, %v676
  %v678 = vsel %vm653, %v635, -inf
  %v679 = vmax.f32 %v671, %v678
  %v680 = vsel %vm653, %v636, -inf
  %v681 = vmax.f32 %v673, %v680
  %v682 = vsel %vm653, %v637, -inf
  %v683 = vmax.f32 %v675, %v682
  %v684 = vsel %vm653, %v638, -inf
  %v685 = vmax.f32 %v677, %v684
  %v686 = vsel %vm653, %v639, -inf
  %v687 = vmax.f32 %v679, %v686
  %v688 = vsel %vm653, %v640, -inf
  %v689 = vmax.f32 %v681, %v688
  %v690 = vsel %vm653, %v641, -inf
  %v691 = vmax.f32 %v683, %v690
  %v692 = vsel %vm653, %v642, -inf
  %v693 = vmax.f32 %v685, %v692
  %v694 = vsel %vm653, %v643, -inf
  %v695 = vmax.f32 %v687, %v694
  %v696 = vsel %vm653, %v644, -inf
  %v697 = vmax.f32 %v689, %v696
  %v698 = vsel %vm653, %v645, -inf
  %v699 = vmax.f32 %v691, %v698
  %v700 = vsel %vm653, %v646, -inf
  %v701 = vmax.f32 %v693, %v700
  %v702 = vsel %vm653, %v647, -inf
  %v703 = vmax.f32 %v695, %v702
  %v704 = vsel %vm653, %v648, -inf
  %v705 = vmax.f32 %v697, %v704
  %v706 = vsel %vm653, %v649, -inf
  %v707 = vmax.f32 %v699, %v706
  %v708 = vsel %vm653, %v650, -inf
  %v709 = vmax.f32 %v701, %v708
  %v710 = vsel %vm653, %v651, -inf
  %v711 = vmax.f32 %v703, %v710
  %v712 = vsel %vm653, %v652, -inf
  %v713 = vmax.f32 %v705, %v712
  %v714 = vmax.f32 %v707, %v709
  %v715 = vmax.f32 %v711, %v713
  %v716 = vmax.f32 %v714, %v715
  %v717 = vrot.slane %v716, 4
  %v718 = vmax.f32 %v716, %v717
  %v719 = vrot.slane %v718, 2
  %v720 = vmax.f32 %v718, %v719
  %v721 = vrot.slane %v720, 1
  %v722 = vmax.f32 %v720, %v721
  %v723 = vsub.f32 %v621, %v722
  %v724 = vsub.f32 %v622, %v722
  %v725 = vsub.f32 %v623, %v722
  %v726 = vsub.f32 %v624, %v722
  %v727 = vsub.f32 %v625, %v722
  %v728 = vsub.f32 %v626, %v722
  %v729 = vsub.f32 %v627, %v722
  %v730 = vsub.f32 %v628, %v722
  %v731 = vsub.f32 %v629, %v722
  %v732 = vsub.f32 %v630, %v722
  %v733 = vsub.f32 %v631, %v722
  %v734 = vsub.f32 %v632, %v722
  %v735 = vsub.f32 %v633, %v722
  %v736 = vsub.f32 %v634, %v722
  %v737 = vsub.f32 %v635, %v722
  %v738 = vsub.f32 %v636, %v722
  %v739 = vsub.f32 %v637, %v722
  %v740 = vsub.f32 %v638, %v722
  %v741 = vsub.f32 %v639, %v722
  %v742 = vsub.f32 %v640, %v722
  %v743 = vsub.f32 %v641, %v722
  %v744 = vsub.f32 %v642, %v722
  %v745 = vsub.f32 %v643, %v722
  %v746 = vsub.f32 %v644, %v722
  %v747 = vsub.f32 %v645, %v722
  %v748 = vsub.f32 %v646, %v722
  %v749 = vsub.f32 %v647, %v722
  %v750 = vsub.f32 %v648, %v722
  %v751 = vsub.f32 %v649, %v722
  %v752 = vsub.f32 %v650, %v722
  %v753 = vsub.f32 %v651, %v722
  %v754 = vsub.f32 %v652, %v722
  %v755 = vmul.f32 %v723, 1.442695
  %v756 = vpow.pop %v755
  %v757 = vmul.f32 %v724, 1.442695
  %v758 = vpow.pop %v757
  %v759 = vmul.f32 %v725, 1.442695
  %v760 = vpow.pop %v759
  %v761 = vmul.f32 %v726, 1.442695
  %v762 = vpow.pop %v761
  %v763 = vmul.f32 %v727, 1.442695
  %v764 = vpow.pop %v763
  %v765 = vmul.f32 %v728, 1.442695
  %v766 = vpow.pop %v765
  %v767 = vmul.f32 %v729, 1.442695
  %v768 = vpow.pop %v767
  %v769 = vmul.f32 %v730, 1.442695
  %v770 = vpow.pop %v769
  %v771 = vmul.f32 %v731, 1.442695
  %v772 = vpow.pop %v771
  %v773 = vmul.f32 %v732, 1.442695
  %v774 = vpow.pop %v773
  %v775 = vmul.f32 %v733, 1.442695
  %v776 = vpow.pop %v775
  %v777 = vmul.f32 %v734, 1.442695
  %v778 = vpow.pop %v777
  %v779 = vmul.f32 %v735, 1.442695
  %v780 = vpow.pop %v779
  %v781 = vmul.f32 %v736, 1.442695
  %v782 = vpow.pop %v781
  %v783 = vmul.f32 %v737, 1.442695
  %v784 = vpow.pop %v783
  %v785 = vmul.f32 %v738, 1.442695
  %v786 = vpow.pop %v785
  %v787 = vmul.f32 %v739, 1.442695
  %v788 = vpow.pop %v787
  %v789 = vmul.f32 %v740, 1.442695
  %v790 = vpow.pop %v789
  %v791 = vmul.f32 %v741, 1.442695
  %v792 = vpow.pop %v791
  %v793 = vmul.f32 %v742, 1.442695
  %v794 = vpow.pop %v793
  %v795 = vmul.f32 %v743, 1.442695
  %v796 = vpow.pop %v795
  %v797 = vmul.f32 %v744, 1.442695
  %v798 = vpow.pop %v797
  %v799 = vmul.f32 %v745, 1.442695
  %v800 = vpow.pop %v799
  %v801 = vmul.f32 %v746, 1.442695
  %v802 = vpow.pop %v801
  %v803 = vmul.f32 %v747, 1.442695
  %v804 = vpow.pop %v803
  %v805 = vmul.f32 %v748, 1.442695
  %v806 = vpow.pop %v805
  %v807 = vmul.f32 %v749, 1.442695
  %v808 = vpow.pop %v807
  %v809 = vmul.f32 %v750, 1.442695
  %v810 = vpow.pop %v809
  %v811 = vmul.f32 %v751, 1.442695
  %v812 = vpow.pop %v811
  %v813 = vmul.f32 %v752, 1.442695
  %v814 = vpow.pop %v813
  %v815 = vmul.f32 %v753, 1.442695
  %v816 = vpow.pop %v815
  %v817 = vmul.f32 %v754, 1.442695
  %v818 = vpow.pop %v817
  %v819 = vsel %vm653, %v756, 0.0
  %v820 = vsel %vm653, %v758, 0.0
  %v821 = vadd.f32 %v819, %v820
  %v822 = vsel %vm653, %v760, 0.0
  %v823 = vadd.f32 %v821, %v822
  %v824 = vsel %vm653, %v762, 0.0
  %v825 = vadd.f32 %v823, %v824
  %v826 = vsel %vm653, %v764, 0.0
  %v827 = vadd.f32 %v825, %v826
  %v828 = vsel %vm653, %v766, 0.0
  %v829 = vadd.f32 %v827, %v828
  %v830 = vsel %vm653, %v768, 0.0
  %v831 = vadd.f32 %v829, %v830
  %v832 = vsel %vm653, %v770, 0.0
  %v833 = vadd.f32 %v831, %v832
  %v834 = vsel %vm653, %v772, 0.0
  %v835 = vadd.f32 %v833, %v834
  %v836 = vsel %vm653, %v774, 0.0
  %v837 = vadd.f32 %v835, %v836
  %v838 = vsel %vm653, %v776, 0.0
  %v839 = vadd.f32 %v837, %v838
  %v840 = vsel %vm653, %v778, 0.0
  %v841 = vadd.f32 %v839, %v840
  %v842 = vsel %vm653, %v780, 0.0
  %v843 = vadd.f32 %v841, %v842
  %v844 = vsel %vm653, %v782, 0.0
  %v845 = vadd.f32 %v843, %v844
  %v846 = vsel %vm653, %v784, 0.0
  %v847 = vadd.f32 %v845, %v846
  %v848 = vsel %vm653, %v786, 0.0
  %v849 = vadd.f32 %v847, %v848
  %v850 = vsel %vm653, %v788, 0.0
  %v851 = vadd.f32 %v849, %v850
  %v852 = vsel %vm653, %v790, 0.0
  %v853 = vadd.f32 %v851, %v852
  %v854 = vsel %vm653, %v792, 0.0
  %v855 = vadd.f32 %v853, %v854
  %v856 = vsel %vm653, %v794, 0.0
  %v857 = vadd.f32 %v855, %v856
  %v858 = vsel %vm653, %v796, 0.0
  %v859 = vadd.f32 %v857, %v858
  %v860 = vsel %vm653, %v798, 0.0
  %v861 = vadd.f32 %v859, %v860
  %v862 = vsel %vm653, %v800, 0.0
  %v863 = vadd.f32 %v861, %v862
  %v864 = vsel %vm653, %v802, 0.0
  %v865 = vadd.f32 %v863, %v864
  %v866 = vsel %vm653, %v804, 0.0
  %v867 = vadd.f32 %v865, %v866
  %v868 = vsel %vm653, %v806, 0.0
  %v869 = vadd.f32 %v867, %v868
  %v870 = vsel %vm653, %v808, 0.0
  %v871 = vadd.f32 %v869, %v870
  %v872 = vsel %vm653, %v810, 0.0
  %v873 = vadd.f32 %v871, %v872
  %v874 = vsel %vm653, %v812, 0.0
  %v875 = vadd.f32 %v873, %v874
  %v876 = vsel %vm653, %v814, 0.0
  %v877 = vadd.f32 %v875, %v876
  %v878 = vsel %vm653, %v816, 0.0
  %v879 = vadd.f32 %v877, %v878
  %v880 = vsel %vm653, %v818, 0.0
  %v881 = vadd.f32 %v879, %v880
  %v882 = vrot.slane %v881, 4
  %v883 = vadd.f32 %v881, %v882
  %v884 = vrot.slane %v883, 2
  %v885 = vadd.f32 %v883, %v884
  %v886 = vrot.slane %v885, 1
  %v887 = vadd.f32 %v885, %v886
  %v888 = vlog2.pop %v887
  %v889 = vmul.f32 %v888, 0.6931472
  %v890 = vadd.f32 %v889, %v722
  %v891 = vsub.f32 %v621, %v890
  %v892 = vsub.f32 %v622, %v890
  %v893 = vsub.f32 %v623, %v890
  %v894 = vsub.f32 %v624, %v890
  %v895 = vsub.f32 %v625, %v890
  %v896 = vsub.f32 %v626, %v890
  %v897 = vsub.f32 %v627, %v890
  %v898 = vsub.f32 %v628, %v890
  %v899 = vsub.f32 %v629, %v890
  %v900 = vsub.f32 %v630, %v890
  %v901 = vsub.f32 %v631, %v890
  %v902 = vsub.f32 %v632, %v890
  %v903 = vsub.f32 %v633, %v890
  %v904 = vsub.f32 %v634, %v890
  %v905 = vsub.f32 %v635, %v890
  %v906 = vsub.f32 %v636, %v890
  %v907 = vsub.f32 %v637, %v890
  %v908 = vsub.f32 %v638, %v890
  %v909 = vsub.f32 %v639, %v890
  %v910 = vsub.f32 %v640, %v890
  %v911 = vsub.f32 %v641, %v890
  %v912 = vsub.f32 %v642, %v890
  %v913 = vsub.f32 %v643, %v890
  %v914 = vsub.f32 %v644, %v890
  %v915 = vsub.f32 %v645, %v890
  %v916 = vsub.f32 %v646, %v890
  %v917 = vsub.f32 %v647, %v890
  %v918 = vsub.f32 %v648, %v890
  %v919 = vsub.f32 %v649, %v890
  %v920 = vsub.f32 %v650, %v890
  %v921 = vsub.f32 %v651, %v890
  %v922 = vsub.f32 %v652, %v890
  %923 = vst.msk [vmem:[%s6] sm:$0xff] %vm653, %v891
  %924 = vst.msk [vmem:[%s6 + $0x8] sm:$0xff] %vm653, %v892
  %925 = vst.msk [vmem:[%s6 + $0x10] sm:$0xff] %vm653, %v893
  %926 = vst.msk [vmem:[%s6 + $0x18] sm:$0xff] %vm653, %v894
  %927 = vst.msk [vmem:[%s6 + $0x20] sm:$0xff] %vm653, %v895
  %928 = vst.msk [vmem:[%s6 + $0x28] sm:$0xff] %vm653, %v896
  %929 = vst.msk [vmem:[%s6 + $0x30] sm:$0xff] %vm653, %v897
  %930 = vst.msk [vmem:[%s6 + $0x38] sm:$0xff] %vm653, %v898
  %931 = vst.msk [vmem:[%s6 + $0x40] sm:$0xff] %vm653, %v899
  %932 = vst.msk [vmem:[%s6 + $0x48] sm:$0xff] %vm653, %v900
  %933 = vst.msk [vmem:[%s6 + $0x50] sm:$0xff] %vm653, %v901
  %934 = vst.msk [vmem:[%s6 + $0x58] sm:$0xff] %vm653, %v902
  %935 = vst.msk [vmem:[%s6 + $0x60] sm:$0xff] %vm653, %v903
  %936 = vst.msk [vmem:[%s6 + $0x68] sm:$0xff] %vm653, %v904
  %937 = vst.msk [vmem:[%s6 + $0x70] sm:$0xff] %vm653, %v905
  %938 = vst.msk [vmem:[%s6 + $0x78] sm:$0xff] %vm653, %v906
  %939 = vst.msk [vmem:[%s6 + $0x80] sm:$0xff] %vm653, %v907
  %940 = vst.msk [vmem:[%s6 + $0x88] sm:$0xff] %vm653, %v908
  %941 = vst.msk [vmem:[%s6 + $0x90] sm:$0xff] %vm653, %v909
  %942 = vst.msk [vmem:[%s6 + $0x98] sm:$0xff] %vm653, %v910
  %943 = vst.msk [vmem:[%s6 + $0xa0] sm:$0xff] %vm653, %v911
  %944 = vst.msk [vmem:[%s6 + $0xa8] sm:$0xff] %vm653, %v912
  %945 = vst.msk [vmem:[%s6 + $0xb0] sm:$0xff] %vm653, %v913
  %946 = vst.msk [vmem:[%s6 + $0xb8] sm:$0xff] %vm653, %v914
  %947 = vst.msk [vmem:[%s6 + $0xc0] sm:$0xff] %vm653, %v915
  %948 = vst.msk [vmem:[%s6 + $0xc8] sm:$0xff] %vm653, %v916
  %949 = vst.msk [vmem:[%s6 + $0xd0] sm:$0xff] %vm653, %v917
  %950 = vst.msk [vmem:[%s6 + $0xd8] sm:$0xff] %vm653, %v918
  %951 = vst.msk [vmem:[%s6 + $0xe0] sm:$0xff] %vm653, %v919
  %952 = vst.msk [vmem:[%s6 + $0xe8] sm:$0xff] %vm653, %v920
  %953 = vst.msk [vmem:[%s6 + $0xf0] sm:$0xff] %vm653, %v921
  %954 = vst.msk [vmem:[%s6 + $0xf8] sm:$0xff] %vm653, %v922
  // Predicated region
  $region26: #{net3_forward.3} parent=0 // pred_check
    _
  $region27: #{net3_forward.3} parent=0 // pred_check_branch
    %956 = sbr.rel (0) target = $region29
  $region28: #{net3_forward.3} parent=0 // pred_region
    _
  $region29: #{net3_forward.3} parent=0 // pred_fallthru
    _
  // Predicated region
  $region30: #{net3_forward.3} parent=0 // pred_check
    _
  $region31: #{net3_forward.3} parent=0 // pred_check_branch
    %958 = sbr.rel (0) target = $region33
  $region32: #{net3_forward.3} parent=0 // pred_region
    _
  $region33: #{net3_forward.3} parent=0 // pred_fallthru
    _

// kernel: net3_forward.2
$region0: #{net3_forward.2}
  #allocation0 [shape = 'u32[]', space=smem, size = 0x4, offset = 0x4, fixed_abs, tag = 'smem constant byte address 0x4 - core index']
  #allocation1 [shape = 'u32[144,128]{1,0:T(1,128)}', space=vmem, size = 0x12000, scoped, tag = 'internal scratch']
  #allocation2 [shape = 'f32[256,32]{1,0:T(8,128)}', space=vmem, size = 0x20000, scoped, tag = 'scratch operand']
  %s0 = inlined_call_operand.vmem [shape: f32[256,16], index: 0, kind: input, shape index: {}]
  %s1 = inlined_call_operand.vmem [shape: f32[16,32], index: 1, kind: input, shape index: {}]
  %s2 = inlined_call_operand.vmem [shape: f32[1,32], index: 2, kind: input, shape index: {}]
  %s3 = inlined_call_operand.vmem [shape: f32[32,32], index: 3, kind: input, shape index: {}]
  %s4 = inlined_call_operand.vmem [shape: f32[1,32], index: 4, kind: input, shape index: {}]
  %s5 = inlined_call_operand.hbm [shape: f32[256,256], index: 5, kind: output, shape index: {0}]
  %s6 = inlined_call_operand.vmem [shape: f32[256,1], index: 6, kind: output, shape index: {1}]
  %7 = xla_tuple %s5, %s6
  %s8 = sld [smem:[#allocation0]]
  $region65: #{net3_forward.2} parent=0
    _
  %s10 = ssub.s32 1, %s8
  %s11 = scalar_select 0, %s10, %s8
  $region1: #{net3_forward.2} parent=0
    #allocation3 [shape = 'u8[131072]{0}', space=vmem, size = 0x20000, scoped, tag = 'output window, operand 0']
    #allocation4 [shape = 's32[2]{0}', space=sflag, size = 0x8, scoped, tag = 'scoped memory for net3_forward.2']
    %12 = vsyncpa [#allocation4], 0
    %s13 = scalar_lea.sflag [#allocation4], 1
    %14 = vsyncpa %s13, 0
    loop: start=0, step=1, limit=6
    $region2: #{net3_forward.2} parent=1 // loop_pre_header
      _
    $region3: #{net3_forward.2} parent=1 // loop_header
      %s16 = sphi 0, %s20
      %p17 = scmp.ge.s32.totalorder %s16, 6
      %s23 = sphi 0, %s35
      %s24 = sphi 0, %s31
      %s25 = sphi 0, %s23
      %s26 = sphi 0, %s24
      %s27 = sphi 0, %s25
      %s28 = sphi 0, %s26
      %s36 = sphi 0, %s36
      %s38 = sphi 0, %s36
      %s39 = sphi 0, %s38
      %s53 = sphi 0, %s39
      %s57 = sphi 0, %s57
      %s59 = sphi 0, %s57
      %s60 = sphi 0, %s59
      %s74 = sphi 0, %s60
      %s78 = sphi 0, %s78
      %s80 = sphi 0, %s78
      %s81 = sphi 0, %s80
      %s95 = sphi 0, %s81
      %s99 = sphi 0, %s99
      %s101 = sphi 0, %s99
      %s102 = sphi 0, %s101
      %s116 = sphi 0, %s102
      %s120 = sphi 0, %s120
      %s122 = sphi 0, %s120
      %s123 = sphi 0, %s122
      %s137 = sphi 0, %s123
      %s145 = sphi 0, %s147
      %s148 = sphi 0, %s145
      %s149 = sphi 0, %s148
      %s165 = sphi 0, %s149
      %s171 = sphi 0, %s173
      %s174 = sphi 0, %s171
      %s175 = sphi 0, %s174
      %s191 = sphi 0, %s175
    $region4: #{net3_forward.2} parent=1 // loop_header_branch
      %19 = sbr.rel (%p17) target = $region8
    $region5: #{net3_forward.2} parent=1 // loop_body
      %s21 = ssub.s32 %s16, 1
      %s22 = ssub.s32 %s16, 2
      %s29 = sadd.s32 1, %s24
      %p30 = scmp.ge.s32.totalorder %s29, 2
      %s31 = scalar_select %p30, 0, %s29
      %s32 = sadd.s32 1, %s23
      %s33 = scalar_select %p30, %s32, %s23
      %p34 = scmp.ge.s32.totalorder %s33, 2
      %s35 = scalar_select %p34, 0, %s33
      %s37 = sadd.s32 %s36, 1
      %p40 = scmp.eq.s32.totalorder %s16, 3
      %p41 = scmp.ne.s32.totalorder %s36, %s38
      %p42 = scmp.eq.s32.totalorder %s16, 0
      %p43 = por %p41, %p42
      %p44 = scmp.ne.s32.totalorder %s36, %s38
      %p45 = scmp.eq.s32.totalorder %s21, 3
      %p46 = por %p44, %p45
      %p47 = scmp.ne.s32.totalorder %s38, %s39
      %p48 = scmp.eq.s32.totalorder %s21, 0
      %p49 = por %p47, %p48
      %p50 = scmp.ne.s32.totalorder %s38, %s39
      %p51 = scmp.eq.s32.totalorder %s22, 3
      %p52 = por %p50, %p51
      %p54 = scmp.ne.s32.totalorder %s39, %s53
      %p55 = scmp.eq.s32.totalorder %s22, 0
      %p56 = por %p54, %p55
      %s58 = sadd.s32 %s57, 1
      %p61 = scmp.eq.s32.totalorder %s16, 3
      %p62 = scmp.ne.s32.totalorder %s57, %s59
      %p63 = scmp.eq.s32.totalorder %s16, 0
      %p64 = por %p62, %p63
      %p65 = scmp.ne.s32.totalorder %s57, %s59
      %p66 = scmp.eq.s32.totalorder %s21, 3
      %p67 = por %p65, %p66
      %p68 = scmp.ne.s32.totalorder %s59, %s60
      %p69 = scmp.eq.s32.totalorder %s21, 0
      %p70 = por %p68, %p69
      %p71 = scmp.ne.s32.totalorder %s59, %s60
      %p72 = scmp.eq.s32.totalorder %s22, 3
      %p73 = por %p71, %p72
      %p75 = scmp.ne.s32.totalorder %s60, %s74
      %p76 = scmp.eq.s32.totalorder %s22, 0
      %p77 = por %p75, %p76
      %s79 = sadd.s32 %s78, 1
      %p82 = scmp.eq.s32.totalorder %s16, 3
      %p83 = scmp.ne.s32.totalorder %s78, %s80
      %p84 = scmp.eq.s32.totalorder %s16, 0
      %p85 = por %p83, %p84
      %p86 = scmp.ne.s32.totalorder %s78, %s80
      %p87 = scmp.eq.s32.totalorder %s21, 3
      %p88 = por %p86, %p87
      %p89 = scmp.ne.s32.totalorder %s80, %s81
      %p90 = scmp.eq.s32.totalorder %s21, 0
      %p91 = por %p89, %p90
      %p92 = scmp.ne.s32.totalorder %s80, %s81
      %p93 = scmp.eq.s32.totalorder %s22, 3
      %p94 = por %p92, %p93
      %p96 = scmp.ne.s32.totalorder %s81, %s95
      %p97 = scmp.eq.s32.totalorder %s22, 0
      %p98 = por %p96, %p97
      %s100 = sadd.s32 %s99, 1
      %p103 = scmp.eq.s32.totalorder %s16, 3
      %p104 = scmp.ne.s32.totalorder %s99, %s101
      %p105 = scmp.eq.s32.totalorder %s16, 0
      %p106 = por %p104, %p105
      %p107 = scmp.ne.s32.totalorder %s99, %s101
      %p108 = scmp.eq.s32.totalorder %s21, 3
      %p109 = por %p107, %p108
      %p110 = scmp.ne.s32.totalorder %s101, %s102
      %p111 = scmp.eq.s32.totalorder %s21, 0
      %p112 = por %p110, %p111
      %p113 = scmp.ne.s32.totalorder %s101, %s102
      %p114 = scmp.eq.s32.totalorder %s22, 3
      %p115 = por %p113, %p114
      %p117 = scmp.ne.s32.totalorder %s102, %s116
      %p118 = scmp.eq.s32.totalorder %s22, 0
      %p119 = por %p117, %p118
      %s121 = sadd.s32 %s120, 1
      %p124 = scmp.eq.s32.totalorder %s16, 3
      %p125 = scmp.ne.s32.totalorder %s120, %s122
      %p126 = scmp.eq.s32.totalorder %s16, 0
      %p127 = por %p125, %p126
      %p128 = scmp.ne.s32.totalorder %s120, %s122
      %p129 = scmp.eq.s32.totalorder %s21, 3
      %p130 = por %p128, %p129
      %p131 = scmp.ne.s32.totalorder %s122, %s123
      %p132 = scmp.eq.s32.totalorder %s21, 0
      %p133 = por %p131, %p132
      %p134 = scmp.ne.s32.totalorder %s122, %s123
      %p135 = scmp.eq.s32.totalorder %s22, 3
      %p136 = por %p134, %p135
      %p138 = scmp.ne.s32.totalorder %s123, %s137
      %p139 = scmp.eq.s32.totalorder %s22, 0
      %p140 = por %p138, %p139
      %s141 = ssub.s32 %s23, %s35
      %s142 = ssub.s32 %s24, %s31
      %s143 = sor.u32 %s141, %s142
      %p144 = scmp.eq.s32.totalorder %s143, 0
      %s146 = sadd.s32 %s145, 1
      %s147 = scalar_select %p144, %s145, %s146
      %p150 = pneg %p144
      %p151 = scmp.eq.s32.totalorder %s16, 3
      %p152 = por %p150, %p151
      %p153 = scmp.ne.s32.totalorder %s145, %s148
      %p154 = scmp.eq.s32.totalorder %s16, 0
      %p155 = por %p153, %p154
      %p156 = scmp.ne.s32.totalorder %s145, %s148
      %p157 = scmp.eq.s32.totalorder %s21, 3
      %p158 = por %p156, %p157
      %p159 = scmp.ne.s32.totalorder %s148, %s149
      %p160 = scmp.eq.s32.totalorder %s21, 0
      %p161 = por %p159, %p160
      %p162 = scmp.ne.s32.totalorder %s148, %s149
      %p163 = scmp.eq.s32.totalorder %s22, 3
      %p164 = por %p162, %p163
      %p166 = scmp.ne.s32.totalorder %s149, %s165
      %p167 = scmp.eq.s32.totalorder %s22, 0
      %p168 = por %p166, %p167
      %s169 = ssub.s32 %s23, %s35
      %p170 = scmp.eq.s32.totalorder %s169, 0
      %s172 = sadd.s32 %s171, 1
      %s173 = scalar_select %p170, %s171, %s172
      %p176 = pneg %p170
      %p177 = scmp.eq.s32.totalorder %s16, 3
      %p178 = por %p176, %p177
      %p179 = scmp.ne.s32.totalorder %s171, %s174
      %p180 = scmp.eq.s32.totalorder %s16, 0
      %p181 = por %p179, %p180
      %p182 = scmp.ne.s32.totalorder %s171, %s174
      %p183 = scmp.eq.s32.totalorder %s21, 3
      %p184 = por %p182, %p183
      %p185 = scmp.ne.s32.totalorder %s174, %s175
      %p186 = scmp.eq.s32.totalorder %s21, 0
      %p187 = por %p185, %p186
      %p188 = scmp.ne.s32.totalorder %s174, %s175
      %p189 = scmp.eq.s32.totalorder %s22, 3
      %p190 = por %p188, %p189
      %p192 = scmp.ne.s32.totalorder %s175, %s191
      %p193 = scmp.eq.s32.totalorder %s22, 0
      %p194 = por %p192, %p193
      %p195 = scmp.le.s32.totalorder 1, %s16
      %p196 = scmp.lt.s32.totalorder %s16, 5
      %p197 = pnand %p195, %p196
      %p198 = pneg %p197
      // Predicated region
      $region9: #{net3_forward.2} parent=5 // pred_check
        _
      $region10: #{net3_forward.2} parent=5 // pred_check_branch
        %200 = sbr.rel (%p197) target = $region12
      $region11: #{net3_forward.2} parent=5 // pred_region
        %s201 = ssub.s32 %s16, 1
        // Predicated region
        $region13: #{net3_forward.2} parent=11 // pred_check
          %p202 = pneg %p49
        $region14: #{net3_forward.2} parent=11 // pred_check_branch
          %204 = sbr.rel (%p202) target = $region16
        $region15: #{net3_forward.2} parent=11 // pred_region
          _
        $region16: #{net3_forward.2} parent=11 // pred_fallthru
          _
        // Predicated region
        $region17: #{net3_forward.2} parent=11 // pred_check
          %p205 = pneg %p70
        $region18: #{net3_forward.2} parent=11 // pred_check_branch
          %207 = sbr.rel (%p205) target = $region20
        $region19: #{net3_forward.2} parent=11 // pred_region
          _
        $region20: #{net3_forward.2} parent=11 // pred_fallthru
          _
        // Predicated region
        $region21: #{net3_forward.2} parent=11 // pred_check
          %p208 = pneg %p91
        $region22: #{net3_forward.2} parent=11 // pred_check_branch
          %210 = sbr.rel (%p208) target = $region24
        $region23: #{net3_forward.2} parent=11 // pred_region
          _
        $region24: #{net3_forward.2} parent=11 // pred_fallthru
          _
        // Predicated region
        $region25: #{net3_forward.2} parent=11 // pred_check
          %p211 = pneg %p112
        $region26: #{net3_forward.2} parent=11 // pred_check_branch
          %213 = sbr.rel (%p211) target = $region28
        $region27: #{net3_forward.2} parent=11 // pred_region
          _
        $region28: #{net3_forward.2} parent=11 // pred_fallthru
          _
        // Predicated region
        $region29: #{net3_forward.2} parent=11 // pred_check
          %p214 = pneg %p133
        $region30: #{net3_forward.2} parent=11 // pred_check_branch
          %216 = sbr.rel (%p214) target = $region32
        $region31: #{net3_forward.2} parent=11 // pred_region
          _
        $region32: #{net3_forward.2} parent=11 // pred_fallthru
          _
      $region12: #{net3_forward.2} parent=5 // pred_fallthru
        _
      %p217 = scmp.lt.s32.totalorder %s16, 4
      // Predicated region
      $region33: #{net3_forward.2} parent=5 // pred_check
        %p218 = pneg %p217
      $region34: #{net3_forward.2} parent=5 // pred_check_branch
        %220 = sbr.rel (%p218) target = $region36
      $region35: #{net3_forward.2} parent=5 // pred_region
        _
      $region36: #{net3_forward.2} parent=5 // pred_fallthru
        _
      %p221 = scmp.le.s32.totalorder 1, %s16
      %p222 = scmp.lt.s32.totalorder %s16, 5
      %p223 = pnand %p221, %p222
      %p224 = pneg %p223
      // Predicated region
      $region37: #{net3_forward.2} parent=5 // pred_check
        _
      $region38: #{net3_forward.2} parent=5 // pred_check_branch
        %226 = sbr.rel (%p223) target = $region40
      $region39: #{net3_forward.2} parent=5 // pred_region
        %s227 = ssub.s32 %s16, 1
        %p228 = pneg %p49
        %p229 = pneg %p46
        %p230 = pneg %p70
        %p231 = pneg %p67
        %p232 = pneg %p91
        %p233 = pneg %p88
        %p234 = pneg %p112
        %p235 = pneg %p109
        %p236 = pneg %p133
        %p237 = pneg %p130
        %p238 = pneg %p161
        %p239 = pneg %p158
        %s240 = sand.u32 %s148, 1
        %s241 = scalar_lea.sflag [#allocation4], %s240
        %s242 = sand.u32 %s148, 1
        %s243 = smul.addr %s242, 128
        %s244 = scalar_lea.vmem [#allocation3], %s243
        %p245 = pneg %p187
        %p246 = pneg %p184
        %s247 = smul.u32 16, %s25
        %p248 = scmp.lt.s32.totalorder %s247, 31
        %s249 = scalar_select %p248, %s247, 31
        %s250 = smul.addr %s249, 8
        %s251 = scalar_lea.vmem %s6, %s250
        %s252 = smul.u32 16, %s25
        %s253 = smul.u32 16, %s25
        %p254 = scmp.lt.s32.totalorder %s253, 31
        %s255 = scalar_select %p254, %s253, 31
        %s256 = smul.addr %s255, 8
        %s257 = scalar_lea.vmem %s6, %s256
        %s258 = smul.u32 16, %s25
        %p259 = scmp.eq.s32.totalorder %s26, 0
        // Predicated region
        $region41: #{net3_forward.2} parent=39 // pred_check
          %p260 = pneg %p259
        $region42: #{net3_forward.2} parent=39 // pred_check_branch
          %262 = sbr.rel (%p260) target = $region44
        $region43: #{net3_forward.2} parent=39 // pred_region
          %v263 = vld [vmem:[%s0] sm:$0xff]
          %v264 = vld [vmem:[%s0 + $0x8] sm:$0xff]
          %v265 = vld [vmem:[%s0 + $0x10] sm:$0xff]
          %v266 = vld [vmem:[%s0 + $0x18] sm:$0xff]
          %v267 = vld [vmem:[%s0 + $0x20] sm:$0xff]
          %v268 = vld [vmem:[%s0 + $0x28] sm:$0xff]
          %v269 = vld [vmem:[%s0 + $0x30] sm:$0xff]
          %v270 = vld [vmem:[%s0 + $0x38] sm:$0xff]
          %v271 = vld [vmem:[%s0 + $0x40] sm:$0xff]
          %v272 = vld [vmem:[%s0 + $0x48] sm:$0xff]
          %v273 = vld [vmem:[%s0 + $0x50] sm:$0xff]
          %v274 = vld [vmem:[%s0 + $0x58] sm:$0xff]
          %v275 = vld [vmem:[%s0 + $0x60] sm:$0xff]
          %v276 = vld [vmem:[%s0 + $0x68] sm:$0xff]
          %v277 = vld [vmem:[%s0 + $0x70] sm:$0xff]
          %v278 = vld [vmem:[%s0 + $0x78] sm:$0xff]
          %v279 = vld [vmem:[%s0 + $0x80] sm:$0xff]
          %v280 = vld [vmem:[%s0 + $0x88] sm:$0xff]
          %v281 = vld [vmem:[%s0 + $0x90] sm:$0xff]
          %v282 = vld [vmem:[%s0 + $0x98] sm:$0xff]
          %v283 = vld [vmem:[%s0 + $0xa0] sm:$0xff]
          %v284 = vld [vmem:[%s0 + $0xa8] sm:$0xff]
          %v285 = vld [vmem:[%s0 + $0xb0] sm:$0xff]
          %v286 = vld [vmem:[%s0 + $0xb8] sm:$0xff]
          %v287 = vld [vmem:[%s0 + $0xc0] sm:$0xff]
          %v288 = vld [vmem:[%s0 + $0xc8] sm:$0xff]
          %v289 = vld [vmem:[%s0 + $0xd0] sm:$0xff]
          %v290 = vld [vmem:[%s0 + $0xd8] sm:$0xff]
          %v291 = vld [vmem:[%s0 + $0xe0] sm:$0xff]
          %v292 = vld [vmem:[%s0 + $0xe8] sm:$0xff]
          %v293 = vld [vmem:[%s0 + $0xf0] sm:$0xff]
          %v294 = vld [vmem:[%s0 + $0xf8] sm:$0xff]
          %v295 = vld [vmem:[%s1] sm:$0xff]
          %v296 = vld [vmem:[%s1 + $0x8] sm:$0xff]
          %v297 = vld [vmem:[%s2] sm:$0x1]
          %v299 = vlaneseq
          %v300 = vshrl.u32 %v299, 7
          %v301 = vsub.s32 0, %v300
          %v302 = vrot.slane %v297, %v301
          %vm304 = vcmask 130048
          %v306 = vsel %vm304, %v263, 0
          %v309 = vsel %vm304, %v264, 0
          %v312 = vsel %vm304, %v265, 0
          %v315 = vsel %vm304, %v266, 0
          %v318 = vsel %vm304, %v267, 0
          %v321 = vsel %vm304, %v268, 0
          %v324 = vsel %vm304, %v269, 0
          %v327 = vsel %vm304, %v270, 0
          %v330 = vsel %vm304, %v271, 0
          %v333 = vsel %vm304, %v272, 0
          %v336 = vsel %vm304, %v273, 0
          %v339 = vsel %vm304, %v274, 0
          %v342 = vsel %vm304, %v275, 0
          %v345 = vsel %vm304, %v276, 0
          %v348 = vsel %vm304, %v277, 0
          %v351 = vsel %vm304, %v278, 0
          %v354 = vsel %vm304, %v279, 0
          %v357 = vsel %vm304, %v280, 0
          %v360 = vsel %vm304, %v281, 0
          %v363 = vsel %vm304, %v282, 0
          %v366 = vsel %vm304, %v283, 0
          %v369 = vsel %vm304, %v284, 0
          %v372 = vsel %vm304, %v285, 0
          %v375 = vsel %vm304, %v286, 0
          %v378 = vsel %vm304, %v287, 0
          %v381 = vsel %vm304, %v288, 0
          %v384 = vsel %vm304, %v289, 0
          %v387 = vsel %vm304, %v290, 0
          %v390 = vsel %vm304, %v291, 0
          %v393 = vsel %vm304, %v292, 0
          %v396 = vsel %vm304, %v293, 0
          %v399 = vsel %vm304, %v294, 0
          %401 = vmatprep.subr.mxu0 0.0
          %402 = vmatpush1.msra.mxu0 0.0
          %403 = vmatprep.subr.mxu0 0.0
          %404 = vmatpush1.msra.mxu0 0.0
          %405 = vmatprep.subr.mxu0 0.0
          %406 = vmatpush1.msra.mxu0 0.0
          %407 = vmatprep.subr.mxu0 0.0
          %408 = vmatpush1.msra.mxu0 0.0
          %409 = vmatprep.subr.mxu0 0.0
          %410 = vmatpush1.msra.mxu0 0.0
          %411 = vmatprep.subr.mxu0 0.0
          %412 = vmatpush1.msra.mxu0 0.0
          %413 = vmatprep.subr.mxu0 0.0
          %414 = vmatpush1.msra.mxu0 0.0
          %415 = vmatprep.subr.mxu0 0.0
          %416 = vmatpush1.msra.mxu0 0.0
          %417 = vmatprep.subr.mxu0 0.0
          %418 = vmatpush1.msra.mxu0 0.0
          %419 = vmatprep.subr.mxu0 0.0
          %420 = vmatpush1.msra.mxu0 0.0
          %421 = vmatprep.subr.mxu0 0.0
          %422 = vmatpush1.msra.mxu0 0.0
          %423 = vmatprep.subr.mxu0 0.0
          %424 = vmatpush1.msra.mxu0 0.0
          %425 = vmatprep.subr.mxu0 0.0
          %426 = vmatpush1.msra.mxu0 0.0
          %427 = vmatprep.subr.mxu0 0.0
          %428 = vmatpush1.msra.mxu0 0.0
          %429 = vmatprep.subr.mxu0 0.0
          %430 = vmatpush1.msra.mxu0 %v296
          %431 = vmatprep.subr.mxu0 0.0
          %432 = vmatpush1.msra.mxu0 %v295
          %433 = vmatprep.subr.mxu0 0.0
          %434 = vmatpush2.msra.mxu0 0.0
          %435 = vmatprep.subr.mxu0 0.0
          %436 = vmatpush2.msra.mxu0 0.0
          %437 = vmatprep.subr.mxu0 0.0
          %438 = vmatpush2.msra.mxu0 0.0
          %439 = vmatprep.subr.mxu0 0.0
          %440 = vmatpush2.msra.mxu0 0.0
          %441 = vmatprep.subr.mxu0 0.0
          %442 = vmatpush2.msra.mxu0 0.0
          %443 = vmatprep.subr.mxu0 0.0
          %444 = vmatpush2.msra.mxu0 0.0
          %445 = vmatprep.subr.mxu0 0.0
          %446 = vmatpush2.msra.mxu0 0.0
          %447 = vmatprep.subr.mxu0 0.0
          %448 = vmatpush2.msra.mxu0 0.0
          %449 = vmatprep.subr.mxu0 0.0
          %450 = vmatpush2.msra.mxu0 0.0
          %451 = vmatprep.subr.mxu0 0.0
          %452 = vmatpush2.msra.mxu0 0.0
          %453 = vmatprep.subr.mxu0 0.0
          %454 = vmatpush2.msra.mxu0 0.0
          %455 = vmatprep.subr.mxu0 0.0
          %456 = vmatpush2.msra.mxu0 0.0
          %457 = vmatprep.subr.mxu0 0.0
          %458 = vmatpush2.msra.mxu0 0.0
          %459 = vmatprep.subr.mxu0 0.0
          %460 = vmatpush2.msra.mxu0 0.0
          %461 = vmatprep.subr.mxu0 0.0
          %462 = vmatpush2.msra.mxu0 0.0
          %463 = vmatprep.subr.mxu0 0.0
          %464 = vmatpush2.msra.mxu0 0.0
          %465 = vmatprep.mubr.f32.mxu0 0.0
          %466 = vmatmul.mubr.f32.gmra.mxu0 %v306
          %v467 = vpop.f32.mrf.mxu0
          %v468 = vadd.f32 %v302, %v467
          %v469 = vpop.f32.mrf.mxu0
          %470 = vmatprep.mubr.f32.mxu0 0.0
          %471 = vmatmul.mubr.f32.gmra.mxu0 %v309
          %v472 = vpop.f32.mrf.mxu0
          %v473 = vadd.f32 %v302, %v472
          %v474 = vpop.f32.mrf.mxu0
          %475 = vmatprep.mubr.f32.mxu0 0.0
          %476 = vmatmul.mubr.f32.gmra.mxu0 %v312
          %v477 = vpop.f32.mrf.mxu0
          %v478 = vadd.f32 %v302, %v477
          %v479 = vpop.f32.mrf.mxu0
          %480 = vmatprep.mubr.f32.mxu0 0.0
          %481 = vmatmul.mubr.f32.gmra.mxu0 %v315
          %v482 = vpop.f32.mrf.mxu0
          %v483 = vadd.f32 %v302, %v482
          %v484 = vpop.f32.mrf.mxu0
          %485 = vmatprep.mubr.f32.mxu0 0.0
          %486 = vmatmul.mubr.f32.gmra.mxu0 %v318
          %v487 = vpop.f32.mrf.mxu0
          %v488 = vadd.f32 %v302, %v487
          %v489 = vpop.f32.mrf.mxu0
          %490 = vmatprep.mubr.f32.mxu0 0.0
          %491 = vmatmul.mubr.f32.gmra.mxu0 %v321
          %v492 = vpop.f32.mrf.mxu0
          %v493 = vadd.f32 %v302, %v492
          %v494 = vpop.f32.mrf.mxu0
          %495 = vmatprep.mubr.f32.mxu0 0.0
          %496 = vmatmul.mubr.f32.gmra.mxu0 %v324
          %v497 = vpop.f32.mrf.mxu0
          %v498 = vadd.f32 %v302, %v497
          %v499 = vpop.f32.mrf.mxu0
          %500 = vmatprep.mubr.f32.mxu0 0.0
          %501 = vmatmul.mubr.f32.gmra.mxu0 %v327
          %v502 = vpop.f32.mrf.mxu0
          %v503 = vadd.f32 %v302, %v502
          %v504 = vpop.f32.mrf.mxu0
          %505 = vmatprep.mubr.f32.mxu0 0.0
          %506 = vmatmul.mubr.f32.gmra.mxu0 %v330
          %v507 = vpop.f32.mrf.mxu0
          %v508 = vadd.f32 %v302, %v507
          %v509 = vpop.f32.mrf.mxu0
          %510 = vmatprep.mubr.f32.mxu0 0.0
          %511 = vmatmul.mubr.f32.gmra.mxu0 %v333
          %v512 = vpop.f32.mrf.mxu0
          %v513 = vadd.f32 %v302, %v512
          %v514 = vpop.f32.mrf.mxu0
          %515 = vmatprep.mubr.f32.mxu0 0.0
          %516 = vmatmul.mubr.f32.gmra.mxu0 %v336
          %v517 = vpop.f32.mrf.mxu0
          %v518 = vadd.f32 %v302, %v517
          %v519 = vpop.f32.mrf.mxu0
          %520 = vmatprep.mubr.f32.mxu0 0.0
          %521 = vmatmul.mubr.f32.gmra.mxu0 %v339
          %v522 = vpop.f32.mrf.mxu0
          %v523 = vadd.f32 %v302, %v522
          %v524 = vpop.f32.mrf.mxu0
          %525 = vmatprep.mubr.f32.mxu0 0.0
          %526 = vmatmul.mubr.f32.gmra.mxu0 %v342
          %v527 = vpop.f32.mrf.mxu0
          %v528 = vadd.f32 %v302, %v527
          %v529 = vpop.f32.mrf.mxu0
          %530 = vmatprep.mubr.f32.mxu0 0.0
          %531 = vmatmul.mubr.f32.gmra.mxu0 %v345
          %v532 = vpop.f32.mrf.mxu0
          %v533 = vadd.f32 %v302, %v532
          %v534 = vpop.f32.mrf.mxu0
          %535 = vmatprep.mubr.f32.mxu0 0.0
          %536 = vmatmul.mubr.f32.gmra.mxu0 %v348
          %v537 = vpop.f32.mrf.mxu0
          %v538 = vadd.f32 %v302, %v537
          %v539 = vpop.f32.mrf.mxu0
          %540 = vmatprep.mubr.f32.mxu0 0.0
          %541 = vmatmul.mubr.f32.gmra.mxu0 %v351
          %v542 = vpop.f32.mrf.mxu0
          %v543 = vadd.f32 %v302, %v542
          %v544 = vpop.f32.mrf.mxu0
          %545 = vmatprep.mubr.f32.mxu0 0.0
          %546 = vmatmul.mubr.f32.gmra.mxu0 %v354
          %v547 = vpop.f32.mrf.mxu0
          %v548 = vadd.f32 %v302, %v547
          %v549 = vpop.f32.mrf.mxu0
          %550 = vmatprep.mubr.f32.mxu0 0.0
          %551 = vmatmul.mubr.f32.gmra.mxu0 %v357
          %v552 = vpop.f32.mrf.mxu0
          %v553 = vadd.f32 %v302, %v552
          %v554 = vpop.f32.mrf.mxu0
          %555 = vmatprep.mubr.f32.mxu0 0.0
          %556 = vmatmul.mubr.f32.gmra.mxu0 %v360
          %v557 = vpop.f32.mrf.mxu0
          %v558 = vadd.f32 %v302, %v557
          %v559 = vpop.f32.mrf.mxu0
          %560 = vmatprep.mubr.f32.mxu0 0.0
          %561 = vmatmul.mubr.f32.gmra.mxu0 %v363
          %v562 = vpop.f32.mrf.mxu0
          %v563 = vadd.f32 %v302, %v562
          %v564 = vpop.f32.mrf.mxu0
          %565 = vmatprep.mubr.f32.mxu0 0.0
          %566 = vmatmul.mubr.f32.gmra.mxu0 %v366
          %v567 = vpop.f32.mrf.mxu0
          %v568 = vadd.f32 %v302, %v567
          %v569 = vpop.f32.mrf.mxu0
          %570 = vmatprep.mubr.f32.mxu0 0.0
          %571 = vmatmul.mubr.f32.gmra.mxu0 %v369
          %v572 = vpop.f32.mrf.mxu0
          %v573 = vadd.f32 %v302, %v572
          %v574 = vpop.f32.mrf.mxu0
          %575 = vmatprep.mubr.f32.mxu0 0.0
          %576 = vmatmul.mubr.f32.gmra.mxu0 %v372
          %v577 = vpop.f32.mrf.mxu0
          %v578 = vadd.f32 %v302, %v577
          %v579 = vpop.f32.mrf.mxu0
          %580 = vmatprep.mubr.f32.mxu0 0.0
          %581 = vmatmul.mubr.f32.gmra.mxu0 %v375
          %v582 = vpop.f32.mrf.mxu0
          %v583 = vadd.f32 %v302, %v582
          %v584 = vpop.f32.mrf.mxu0
          %585 = vmatprep.mubr.f32.mxu0 0.0
          %586 = vmatmul.mubr.f32.gmra.mxu0 %v378
          %v587 = vpop.f32.mrf.mxu0
          %v588 = vadd.f32 %v302, %v587
          %v589 = vpop.f32.mrf.mxu0
          %590 = vmatprep.mubr.f32.mxu0 0.0
          %591 = vmatmul.mubr.f32.gmra.mxu0 %v381
          %v592 = vpop.f32.mrf.mxu0
          %v593 = vadd.f32 %v302, %v592
          %v594 = vpop.f32.mrf.mxu0
          %595 = vmatprep.mubr.f32.mxu0 0.0
          %596 = vmatmul.mubr.f32.gmra.mxu0 %v384
          %v597 = vpop.f32.mrf.mxu0
          %v598 = vadd.f32 %v302, %v597
          %v599 = vpop.f32.mrf.mxu0
          %600 = vmatprep.mubr.f32.mxu0 0.0
          %601 = vmatmul.mubr.f32.gmra.mxu0 %v387
          %v602 = vpop.f32.mrf.mxu0
          %v603 = vadd.f32 %v302, %v602
          %v604 = vpop.f32.mrf.mxu0
          %605 = vmatprep.mubr.f32.mxu0 0.0
          %606 = vmatmul.mubr.f32.gmra.mxu0 %v390
          %v607 = vpop.f32.mrf.mxu0
          %v608 = vadd.f32 %v302, %v607
          %v609 = vpop.f32.mrf.mxu0
          %610 = vmatprep.mubr.f32.mxu0 0.0
          %611 = vmatmul.mubr.f32.gmra.mxu0 %v393
          %v612 = vpop.f32.mrf.mxu0
          %v613 = vadd.f32 %v302, %v612
          %v614 = vpop.f32.mrf.mxu0
          %615 = vmatprep.mubr.f32.mxu0 0.0
          %616 = vmatmul.mubr.f32.gmra.mxu0 %v396
          %v617 = vpop.f32.mrf.mxu0
          %v618 = vadd.f32 %v302, %v617
          %v619 = vpop.f32.mrf.mxu0
          %620 = vmatprep.mubr.f32.mxu0 0.0
          %621 = vmatmul.mubr.f32.gmra.mxu0 %v399
          %v622 = vpop.f32.mrf.mxu0
          %v623 = vadd.f32 %v302, %v622
          %v624 = vpop.f32.mrf.mxu0
          %625 = vdwg.mxu0
          %v626 = vmax.f32 %v468, 0.0
          %v627 = vmax.f32 %v473, 0.0
          %v628 = vmax.f32 %v478, 0.0
          %v629 = vmax.f32 %v483, 0.0
          %v630 = vmax.f32 %v488, 0.0
          %v631 = vmax.f32 %v493, 0.0
          %v632 = vmax.f32 %v498, 0.0
          %v633 = vmax.f32 %v503, 0.0
          %v634 = vmax.f32 %v508, 0.0
          %v635 = vmax.f32 %v513, 0.0
          %v636 = vmax.f32 %v518, 0.0
          %v637 = vmax.f32 %v523, 0.0
          %v638 = vmax.f32 %v528, 0.0
          %v639 = vmax.f32 %v533, 0.0
          %v640 = vmax.f32 %v538, 0.0
          %v641 = vmax.f32 %v543, 0.0
          %v642 = vmax.f32 %v548, 0.0
          %v643 = vmax.f32 %v553, 0.0
          %v644 = vmax.f32 %v558, 0.0
          %v645 = vmax.f32 %v563, 0.0
          %v646 = vmax.f32 %v568, 0.0
          %v647 = vmax.f32 %v573, 0.0
          %v648 = vmax.f32 %v578, 0.0
          %v649 = vmax.f32 %v583, 0.0
          %v650 = vmax.f32 %v588, 0.0
          %v651 = vmax.f32 %v593, 0.0
          %v652 = vmax.f32 %v598, 0.0
          %v653 = vmax.f32 %v603, 0.0
          %v654 = vmax.f32 %v608, 0.0
          %v655 = vmax.f32 %v613, 0.0
          %v656 = vmax.f32 %v618, 0.0
          %v657 = vmax.f32 %v623, 0.0
          %v658 = vld [vmem:[%s3] sm:$0xff]
          %v659 = vld [vmem:[%s3 + $0x8] sm:$0xff]
          %v660 = vld [vmem:[%s3 + $0x10] sm:$0xff]
          %v661 = vld [vmem:[%s3 + $0x18] sm:$0xff]
          %v662 = vld [vmem:[%s4] sm:$0x1]
          %v664 = vlaneseq
          %v665 = vshrl.u32 %v664, 7
          %v666 = vsub.s32 0, %v665
          %v667 = vrot.slane %v662, %v666
          %vm669 = vcmask 261120
          %v671 = vsel %vm669, %v626, 0
          %v674 = vsel %vm669, %v627, 0
          %v677 = vsel %vm669, %v628, 0
          %v680 = vsel %vm669, %v629, 0
          %v683 = vsel %vm669, %v630, 0
          %v686 = vsel %vm669, %v631, 0
          %v689 = vsel %vm669, %v632, 0
          %v692 = vsel %vm669, %v633, 0
          %v695 = vsel %vm669, %v634, 0
          %v698 = vsel %vm669, %v635, 0
          %v701 = vsel %vm669, %v636, 0
          %v704 = vsel %vm669, %v637, 0
          %v707 = vsel %vm669, %v638, 0
          %v710 = vsel %vm669, %v639, 0
          %v713 = vsel %vm669, %v640, 0
          %v716 = vsel %vm669, %v641, 0
          %v719 = vsel %vm669, %v642, 0
          %v722 = vsel %vm669, %v643, 0
          %v725 = vsel %vm669, %v644, 0
          %v728 = vsel %vm669, %v645, 0
          %v731 = vsel %vm669, %v646, 0
          %v734 = vsel %vm669, %v647, 0
          %v737 = vsel %vm669, %v648, 0
          %v740 = vsel %vm669, %v649, 0
          %v743 = vsel %vm669, %v650, 0
          %v746 = vsel %vm669, %v651, 0
          %v749 = vsel %vm669, %v652, 0
          %v752 = vsel %vm669, %v653, 0
          %v755 = vsel %vm669, %v654, 0
          %v758 = vsel %vm669, %v655, 0
          %v761 = vsel %vm669, %v656, 0
          %v764 = vsel %vm669, %v657, 0
          %766 = vmatprep.subr.mxu0 0.0
          %767 = vmatpush1.msra.mxu0 0.0
          %768 = vmatprep.subr.mxu0 0.0
          %769 = vmatpush1.msra.mxu0 0.0
          %770 = vmatprep.subr.mxu0 0.0
          %771 = vmatpush1.msra.mxu0 0.0
          %772 = vmatprep.subr.mxu0 0.0
          %773 = vmatpush1.msra.mxu0 0.0
          %774 = vmatprep.subr.mxu0 0.0
          %775 = vmatpush1.msra.mxu0 0.0
          %776 = vmatprep.subr.mxu0 0.0
          %777 = vmatpush1.msra.mxu0 0.0
          %778 = vmatprep.subr.mxu0 0.0
          %779 = vmatpush1.msra.mxu0 0.0
          %780 = vmatprep.subr.mxu0 0.0
          %781 = vmatpush1.msra.mxu0 0.0
          %782 = vmatprep.subr.mxu0 0.0
          %783 = vmatpush1.msra.mxu0 0.0
          %784 = vmatprep.subr.mxu0 0.0
          %785 = vmatpush1.msra.mxu0 0.0
          %786 = vmatprep.subr.mxu0 0.0
          %787 = vmatpush1.msra.mxu0 0.0
          %788 = vmatprep.subr.mxu0 0.0
          %789 = vmatpush1.msra.mxu0 0.0
          %790 = vmatprep.subr.mxu0 0.0
          %791 = vmatpush1.msra.mxu0 %v661
          %792 = vmatprep.subr.mxu0 0.0
          %793 = vmatpush1.msra.mxu0 %v660
          %794 = vmatprep.subr.mxu0 0.0
          %795 = vmatpush1.msra.mxu0 %v659
          %796 = vmatprep.subr.mxu0 0.0
          %797 = vmatpush1.msra.mxu0 %v658
          %798 = vmatprep.subr.mxu0 0.0
          %799 = vmatpush2.msra.mxu0 0.0
          %800 = vmatprep.subr.mxu0 0.0
          %801 = vmatpush2.msra.mxu0 0.0
          %802 = vmatprep.subr.mxu0 0.0
          %803 = vmatpush2.msra.mxu0 0.0
          %804 = vmatprep.subr.mxu0 0.0
          %805 = vmatpush2.msra.mxu0 0.0
          %806 = vmatprep.subr.mxu0 0.0
          %807 = vmatpush2.msra.mxu0 0.0
          %808 = vmatprep.subr.mxu0 0.0
          %809 = vmatpush2.msra.mxu0 0.0
          %810 = vmatprep.subr.mxu0 0.0
          %811 = vmatpush2.msra.mxu0 0.0
          %812 = vmatprep.subr.mxu0 0.0
          %813 = vmatpush2.msra.mxu0 0.0
          %814 = vmatprep.subr.mxu0 0.0
          %815 = vmatpush2.msra.mxu0 0.0
          %816 = vmatprep.subr.mxu0 0.0
          %817 = vmatpush2.msra.mxu0 0.0
          %818 = vmatprep.subr.mxu0 0.0
          %819 = vmatpush2.msra.mxu0 0.0
          %820 = vmatprep.subr.mxu0 0.0
          %821 = vmatpush2.msra.mxu0 0.0
          %822 = vmatprep.subr.mxu0 0.0
          %823 = vmatpush2.msra.mxu0 0.0
          %824 = vmatprep.subr.mxu0 0.0
          %825 = vmatpush2.msra.mxu0 0.0
          %826 = vmatprep.subr.mxu0 0.0
          %827 = vmatpush2.msra.mxu0 0.0
          %828 = vmatprep.subr.mxu0 0.0
          %829 = vmatpush2.msra.mxu0 0.0
          %830 = vmatprep.mubr.f32.mxu0 0.0
          %831 = vmatmul.mubr.f32.gmra.mxu0 %v671
          %v832 = vpop.f32.mrf.mxu0
          %v833 = vadd.f32 %v667, %v832
          %v834 = vpop.f32.mrf.mxu0
          %835 = vmatprep.mubr.f32.mxu0 0.0
          %836 = vmatmul.mubr.f32.gmra.mxu0 %v674
          %v837 = vpop.f32.mrf.mxu0
          %v838 = vadd.f32 %v667, %v837
          %v839 = vpop.f32.mrf.mxu0
          %840 = vmatprep.mubr.f32.mxu0 0.0
          %841 = vmatmul.mubr.f32.gmra.mxu0 %v677
          %v842 = vpop.f32.mrf.mxu0
          %v843 = vadd.f32 %v667, %v842
          %v844 = vpop.f32.mrf.mxu0
          %845 = vmatprep.mubr.f32.mxu0 0.0
          %846 = vmatmul.mubr.f32.gmra.mxu0 %v680
          %v847 = vpop.f32.mrf.mxu0
          %v848 = vadd.f32 %v667, %v847
          %v849 = vpop.f32.mrf.mxu0
          %850 = vmatprep.mubr.f32.mxu0 0.0
          %851 = vmatmul.mubr.f32.gmra.mxu0 %v683
          %v852 = vpop.f32.mrf.mxu0
          %v853 = vadd.f32 %v667, %v852
          %v854 = vpop.f32.mrf.mxu0
          %855 = vmatprep.mubr.f32.mxu0 0.0
          %856 = vmatmul.mubr.f32.gmra.mxu0 %v686
          %v857 = vpop.f32.mrf.mxu0
          %v858 = vadd.f32 %v667, %v857
          %v859 = vpop.f32.mrf.mxu0
          %860 = vmatprep.mubr.f32.mxu0 0.0
          %861 = vmatmul.mubr.f32.gmra.mxu0 %v689
          %v862 = vpop.f32.mrf.mxu0
          %v863 = vadd.f32 %v667, %v862
          %v864 = vpop.f32.mrf.mxu0
          %865 = vmatprep.mubr.f32.mxu0 0.0
          %866 = vmatmul.mubr.f32.gmra.mxu0 %v692
          %v867 = vpop.f32.mrf.mxu0
          %v868 = vadd.f32 %v667, %v867
          %v869 = vpop.f32.mrf.mxu0
          %870 = vmatprep.mubr.f32.mxu0 0.0
          %871 = vmatmul.mubr.f32.gmra.mxu0 %v695
          %v872 = vpop.f32.mrf.mxu0
          %v873 = vadd.f32 %v667, %v872
          %v874 = vpop.f32.mrf.mxu0
          %875 = vmatprep.mubr.f32.mxu0 0.0
          %876 = vmatmul.mubr.f32.gmra.mxu0 %v698
          %v877 = vpop.f32.mrf.mxu0
          %v878 = vadd.f32 %v667, %v877
          %v879 = vpop.f32.mrf.mxu0
          %880 = vmatprep.mubr.f32.mxu0 0.0
          %881 = vmatmul.mubr.f32.gmra.mxu0 %v701
          %v882 = vpop.f32.mrf.mxu0
          %v883 = vadd.f32 %v667, %v882
          %v884 = vpop.f32.mrf.mxu0
          %885 = vmatprep.mubr.f32.mxu0 0.0
          %886 = vmatmul.mubr.f32.gmra.mxu0 %v704
          %v887 = vpop.f32.mrf.mxu0
          %v888 = vadd.f32 %v667, %v887
          %v889 = vpop.f32.mrf.mxu0
          %890 = vmatprep.mubr.f32.mxu0 0.0
          %891 = vmatmul.mubr.f32.gmra.mxu0 %v707
          %v892 = vpop.f32.mrf.mxu0
          %v893 = vadd.f32 %v667, %v892
          %v894 = vpop.f32.mrf.mxu0
          %895 = vmatprep.mubr.f32.mxu0 0.0
          %896 = vmatmul.mubr.f32.gmra.mxu0 %v710
          %v897 = vpop.f32.mrf.mxu0
          %v898 = vadd.f32 %v667, %v897
          %v899 = vpop.f32.mrf.mxu0
          %900 = vmatprep.mubr.f32.mxu0 0.0
          %901 = vmatmul.mubr.f32.gmra.mxu0 %v713
          %v902 = vpop.f32.mrf.mxu0
          %v903 = vadd.f32 %v667, %v902
          %v904 = vpop.f32.mrf.mxu0
          %905 = vmatprep.mubr.f32.mxu0 0.0
          %906 = vmatmul.mubr.f32.gmra.mxu0 %v716
          %v907 = vpop.f32.mrf.mxu0
          %v908 = vadd.f32 %v667, %v907
          %v909 = vpop.f32.mrf.mxu0
          %910 = vmatprep.mubr.f32.mxu0 0.0
          %911 = vmatmul.mubr.f32.gmra.mxu0 %v719
          %v912 = vpop.f32.mrf.mxu0
          %v913 = vadd.f32 %v667, %v912
          %v914 = vpop.f32.mrf.mxu0
          %915 = vmatprep.mubr.f32.mxu0 0.0
          %916 = vmatmul.mubr.f32.gmra.mxu0 %v722
          %v917 = vpop.f32.mrf.mxu0
          %v918 = vadd.f32 %v667, %v917
          %v919 = vpop.f32.mrf.mxu0
          %920 = vmatprep.mubr.f32.mxu0 0.0
          %921 = vmatmul.mubr.f32.gmra.mxu0 %v725
          %v922 = vpop.f32.mrf.mxu0
          %v923 = vadd.f32 %v667, %v922
          %v924 = vpop.f32.mrf.mxu0
          %925 = vmatprep.mubr.f32.mxu0 0.0
          %926 = vmatmul.mubr.f32.gmra.mxu0 %v728
          %v927 = vpop.f32.mrf.mxu0
          %v928 = vadd.f32 %v667, %v927
          %v929 = vpop.f32.mrf.mxu0
          %930 = vmatprep.mubr.f32.mxu0 0.0
          %931 = vmatmul.mubr.f32.gmra.mxu0 %v731
          %v932 = vpop.f32.mrf.mxu0
          %v933 = vadd.f32 %v667, %v932
          %v934 = vpop.f32.mrf.mxu0
          %935 = vmatprep.mubr.f32.mxu0 0.0
          %936 = vmatmul.mubr.f32.gmra.mxu0 %v734
          %v937 = vpop.f32.mrf.mxu0
          %v938 = vadd.f32 %v667, %v937
          %v939 = vpop.f32.mrf.mxu0
          %940 = vmatprep.mubr.f32.mxu0 0.0
          %941 = vmatmul.mubr.f32.gmra.mxu0 %v737
          %v942 = vpop.f32.mrf.mxu0
          %v943 = vadd.f32 %v667, %v942
          %v944 = vpop.f32.mrf.mxu0
          %945 = vmatprep.mubr.f32.mxu0 0.0
          %946 = vmatmul.mubr.f32.gmra.mxu0 %v740
          %v947 = vpop.f32.mrf.mxu0
          %v948 = vadd.f32 %v667, %v947
          %v949 = vpop.f32.mrf.mxu0
          %950 = vmatprep.mubr.f32.mxu0 0.0
          %951 = vmatmul.mubr.f32.gmra.mxu0 %v743
          %v952 = vpop.f32.mrf.mxu0
          %v953 = vadd.f32 %v667, %v952
          %v954 = vpop.f32.mrf.mxu0
          %955 = vmatprep.mubr.f32.mxu0 0.0
          %956 = vmatmul.mubr.f32.gmra.mxu0 %v746
          %v957 = vpop.f32.mrf.mxu0
          %v958 = vadd.f32 %v667, %v957
          %v959 = vpop.f32.mrf.mxu0
          %960 = vmatprep.mubr.f32.mxu0 0.0
          %961 = vmatmul.mubr.f32.gmra.mxu0 %v749
          %v962 = vpop.f32.mrf.mxu0
          %v963 = vadd.f32 %v667, %v962
          %v964 = vpop.f32.mrf.mxu0
          %965 = vmatprep.mubr.f32.mxu0 0.0
          %966 = vmatmul.mubr.f32.gmra.mxu0 %v752
          %v967 = vpop.f32.mrf.mxu0
          %v968 = vadd.f32 %v667, %v967
          %v969 = vpop.f32.mrf.mxu0
          %970 = vmatprep.mubr.f32.mxu0 0.0
          %971 = vmatmul.mubr.f32.gmra.mxu0 %v755
          %v972 = vpop.f32.mrf.mxu0
          %v973 = vadd.f32 %v667, %v972
          %v974 = vpop.f32.mrf.mxu0
          %975 = vmatprep.mubr.f32.mxu0 0.0
          %976 = vmatmul.mubr.f32.gmra.mxu0 %v758
          %v977 = vpop.f32.mrf.mxu0
          %v978 = vadd.f32 %v667, %v977
          %v979 = vpop.f32.mrf.mxu0
          %980 = vmatprep.mubr.f32.mxu0 0.0
          %981 = vmatmul.mubr.f32.gmra.mxu0 %v761
          %v982 = vpop.f32.mrf.mxu0
          %v983 = vadd.f32 %v667, %v982
          %v984 = vpop.f32.mrf.mxu0
          %985 = vmatprep.mubr.f32.mxu0 0.0
          %986 = vmatmul.mubr.f32.gmra.mxu0 %v764
          %v987 = vpop.f32.mrf.mxu0
          %v988 = vadd.f32 %v667, %v987
          %v989 = vpop.f32.mrf.mxu0
          %990 = vdwg.mxu0
          %991 = vst.msk [vmem:[#allocation2] sm:$0xff] %vm669, %v833
          %992 = vst.msk [vmem:[#allocation2 + $0x8] sm:$0xff] %vm669, %v838
          %993 = vst.msk [vmem:[#allocation2 + $0x10] sm:$0xff] %vm669, %v843
          %994 = vst.msk [vmem:[#allocation2 + $0x18] sm:$0xff] %vm669, %v848
          %995 = vst.msk [vmem:[#allocation2 + $0x20] sm:$0xff] %vm669, %v853
          %996 = vst.msk [vmem:[#allocation2 + $0x28] sm:$0xff] %vm669, %v858
          %997 = vst.msk [vmem:[#allocation2 + $0x30] sm:$0xff] %vm669, %v863
          %998 = vst.msk [vmem:[#allocation2 + $0x38] sm:$0xff] %vm669, %v868
          %999 = vst.msk [vmem:[#allocation2 + $0x40] sm:$0xff] %vm669, %v873
          %1000 = vst.msk [vmem:[#allocation2 + $0x48] sm:$0xff] %vm669, %v878
          %1001 = vst.msk [vmem:[#allocation2 + $0x50] sm:$0xff] %vm669, %v883
          %1002 = vst.msk [vmem:[#allocation2 + $0x58] sm:$0xff] %vm669, %v888
          %1003 = vst.msk [vmem:[#allocation2 + $0x60] sm:$0xff] %vm669, %v893
          %1004 = vst.msk [vmem:[#allocation2 + $0x68] sm:$0xff] %vm669, %v898
          %1005 = vst.msk [vmem:[#allocation2 + $0x70] sm:$0xff] %vm669, %v903
          %1006 = vst.msk [vmem:[#allocation2 + $0x78] sm:$0xff] %vm669, %v908
          %1007 = vst.msk [vmem:[#allocation2 + $0x80] sm:$0xff] %vm669, %v913
          %1008 = vst.msk [vmem:[#allocation2 + $0x88] sm:$0xff] %vm669, %v918
          %1009 = vst.msk [vmem:[#allocation2 + $0x90] sm:$0xff] %vm669, %v923
          %1010 = vst.msk [vmem:[#allocation2 + $0x98] sm:$0xff] %vm669, %v928
          %1011 = vst.msk [vmem:[#allocation2 + $0xa0] sm:$0xff] %vm669, %v933
          %1012 = vst.msk [vmem:[#allocation2 + $0xa8] sm:$0xff] %vm669, %v938
          %1013 = vst.msk [vmem:[#allocation2 + $0xb0] sm:$0xff] %vm669, %v943
          %1014 = vst.msk [vmem:[#allocation2 + $0xb8] sm:$0xff] %vm669, %v948
          %1015 = vst.msk [vmem:[#allocation2 + $0xc0] sm:$0xff] %vm669, %v953
          %1016 = vst.msk [vmem:[#allocation2 + $0xc8] sm:$0xff] %vm669, %v958
          %1017 = vst.msk [vmem:[#allocation2 + $0xd0] sm:$0xff] %vm669, %v963
          %1018 = vst.msk [vmem:[#allocation2 + $0xd8] sm:$0xff] %vm669, %v968
          %1019 = vst.msk [vmem:[#allocation2 + $0xe0] sm:$0xff] %vm669, %v973
          %1020 = vst.msk [vmem:[#allocation2 + $0xe8] sm:$0xff] %vm669, %v978
          %1021 = vst.msk [vmem:[#allocation2 + $0xf0] sm:$0xff] %vm669, %v983
          %1022 = vst.msk [vmem:[#allocation2 + $0xf8] sm:$0xff] %vm669, %v988
          %vm1023 = vcmask 7168
          %1024 = vst.msk [vmem:[%s257] sm:$0xff] %vm1023, 0.0
          %1025 = vst.msk [vmem:[%s257 + $0x8] sm:$0xff] %vm1023, 0.0
          %1026 = vst.msk [vmem:[%s257 + $0x10] sm:$0xff] %vm1023, 0.0
          %1027 = vst.msk [vmem:[%s257 + $0x18] sm:$0xff] %vm1023, 0.0
          %1028 = vst.msk [vmem:[%s257 + $0x20] sm:$0xff] %vm1023, 0.0
          %1029 = vst.msk [vmem:[%s257 + $0x28] sm:$0xff] %vm1023, 0.0
          %1030 = vst.msk [vmem:[%s257 + $0x30] sm:$0xff] %vm1023, 0.0
          %1031 = vst.msk [vmem:[%s257 + $0x38] sm:$0xff] %vm1023, 0.0
          %1032 = vst.msk [vmem:[%s257 + $0x40] sm:$0xff] %vm1023, 0.0
          %1033 = vst.msk [vmem:[%s257 + $0x48] sm:$0xff] %vm1023, 0.0
          %1034 = vst.msk [vmem:[%s257 + $0x50] sm:$0xff] %vm1023, 0.0
          %1035 = vst.msk [vmem:[%s257 + $0x58] sm:$0xff] %vm1023, 0.0
          %1036 = vst.msk [vmem:[%s257 + $0x60] sm:$0xff] %vm1023, 0.0
          %1037 = vst.msk [vmem:[%s257 + $0x68] sm:$0xff] %vm1023, 0.0
          %1038 = vst.msk [vmem:[%s257 + $0x70] sm:$0xff] %vm1023, 0.0
          %1039 = vst.msk [vmem:[%s257 + $0x78] sm:$0xff] %vm1023, 0.0
        $region44: #{net3_forward.2} parent=39 // pred_fallthru
          _
        %s1040 = smul.u32 %s25, 128
        %s1041 = smul.u32 %s26, 128
        %s1042 = scalar_lea.vmem [#allocation2], %s1040
        %v1043 = vld [vmem:[%s1042] sm:$0xff]
        %v1044 = vld [vmem:[%s1042 + $0x8] sm:$0xff]
        %v1045 = vld [vmem:[%s1042 + $0x10] sm:$0xff]
        %v1046 = vld [vmem:[%s1042 + $0x18] sm:$0xff]
        %v1047 = vld [vmem:[%s1042 + $0x20] sm:$0xff]
        %v1048 = vld [vmem:[%s1042 + $0x28] sm:$0xff]
        %v1049 = vld [vmem:[%s1042 + $0x30] sm:$0xff]
        %v1050 = vld [vmem:[%s1042 + $0x38] sm:$0xff]
        %v1051 = vld [vmem:[%s1042 + $0x40] sm:$0xff]
        %v1052 = vld [vmem:[%s1042 + $0x48] sm:$0xff]
        %v1053 = vld [vmem:[%s1042 + $0x50] sm:$0xff]
        %v1054 = vld [vmem:[%s1042 + $0x58] sm:$0xff]
        %v1055 = vld [vmem:[%s1042 + $0x60] sm:$0xff]
        %v1056 = vld [vmem:[%s1042 + $0x68] sm:$0xff]
        %v1057 = vld [vmem:[%s1042 + $0x70] sm:$0xff]
        %v1058 = vld [vmem:[%s1042 + $0x78] sm:$0xff]
        %s1059 = scalar_lea.vmem [#allocation2], %s1041
        %v1060 = vld [vmem:[%s1059] sm:$0xff]
        %v1061 = vld [vmem:[%s1059 + $0x8] sm:$0xff]
        %v1062 = vld [vmem:[%s1059 + $0x10] sm:$0xff]
        %v1063 = vld [vmem:[%s1059 + $0x18] sm:$0xff]
        %v1064 = vld [vmem:[%s1059 + $0x20] sm:$0xff]
        %v1065 = vld [vmem:[%s1059 + $0x28] sm:$0xff]
        %v1066 = vld [vmem:[%s1059 + $0x30] sm:$0xff]
        %v1067 = vld [vmem:[%s1059 + $0x38] sm:$0xff]
        %v1068 = vld [vmem:[%s1059 + $0x40] sm:$0xff]
        %v1069 = vld [vmem:[%s1059 + $0x48] sm:$0xff]
        %v1070 = vld [vmem:[%s1059 + $0x50] sm:$0xff]
        %v1071 = vld [vmem:[%s1059 + $0x58] sm:$0xff]
        %v1072 = vld [vmem:[%s1059 + $0x60] sm:$0xff]
        %v1073 = vld [vmem:[%s1059 + $0x68] sm:$0xff]
        %v1074 = vld [vmem:[%s1059 + $0x70] sm:$0xff]
        %v1075 = vld [vmem:[%s1059 + $0x78] sm:$0xff]
        %vm1076 = vcmask 261120
        %v1078 = vsel %vm1076, %v1043, 0
        %v1081 = vsel %vm1076, %v1044, 0
        %v1084 = vsel %vm1076, %v1045, 0
        %v1087 = vsel %vm1076, %v1046, 0
        %v1090 = vsel %vm1076, %v1047, 0
        %v1093 = vsel %vm1076, %v1048, 0
        %v1096 = vsel %vm1076, %v1049, 0
        %v1099 = vsel %vm1076, %v1050, 0
        %v1102 = vsel %vm1076, %v1051, 0
        %v1105 = vsel %vm1076, %v1052, 0
        %v1108 = vsel %vm1076, %v1053, 0
        %v1111 = vsel %vm1076, %v1054, 0
        %v1114 = vsel %vm1076, %v1055, 0
        %v1117 = vsel %vm1076, %v1056, 0
        %v1120 = vsel %vm1076, %v1057, 0
        %v1123 = vsel %vm1076, %v1058, 0
        %v1126 = vsel %vm1076, %v1060, 0
        %v1129 = vsel %vm1076, %v1061, 0
        %v1132 = vsel %vm1076, %v1062, 0
        %v1135 = vsel %vm1076, %v1063, 0
        %v1138 = vsel %vm1076, %v1064, 0
        %v1141 = vsel %vm1076, %v1065, 0
        %v1144 = vsel %vm1076, %v1066, 0
        %v1147 = vsel %vm1076, %v1067, 0
        %v1150 = vsel %vm1076, %v1068, 0
        %v1153 = vsel %vm1076, %v1069, 0
        %v1156 = vsel %vm1076, %v1070, 0
        %v1159 = vsel %vm1076, %v1071, 0
        %v1162 = vsel %vm1076, %v1072, 0
        %v1165 = vsel %vm1076, %v1073, 0
        %v1168 = vsel %vm1076, %v1074, 0
        %v1171 = vsel %vm1076, %v1075, 0
        %1173 = vmatprep.subr.mxu0 0.0
        %1174 = vmatpush1.xpose.msra.mxu0 %v1171
        %1175 = vmatprep.subr.mxu0 0.0
        %1176 = vmatpush1.xpose.msra.mxu0 %v1168
        %1177 = vmatprep.subr.mxu0 0.0
        %1178 = vmatpush1.xpose.msra.mxu0 %v1165
        %1179 = vmatprep.subr.mxu0 0.0
        %1180 = vmatpush1.xpose.msra.mxu0 %v1162
        %1181 = vmatprep.subr.mxu0 0.0
        %1182 = vmatpush1.xpose.msra.mxu0 %v1159
        %1183 = vmatprep.subr.mxu0 0.0
        %1184 = vmatpush1.xpose.msra.mxu0 %v1156
        %1185 = vmatprep.subr.mxu0 0.0
        %1186 = vmatpush1.xpose.msra.mxu0 %v1153
        %1187 = vmatprep.subr.mxu0 0.0
        %1188 = vmatpush1.xpose.msra.mxu0 %v1150
        %1189 = vmatprep.subr.mxu0 0.0
        %1190 = vmatpush1.xpose.msra.mxu0 %v1147
        %1191 = vmatprep.subr.mxu0 0.0
        %1192 = vmatpush1.xpose.msra.mxu0 %v1144
        %1193 = vmatprep.subr.mxu0 0.0
        %1194 = vmatpush1.xpose.msra.mxu0 %v1141
        %1195 = vmatprep.subr.mxu0 0.0
        %1196 = vmatpush1.xpose.msra.mxu0 %v1138
        %1197 = vmatprep.subr.mxu0 0.0
        %1198 = vmatpush1.xpose.msra.mxu0 %v1135
        %1199 = vmatprep.subr.mxu0 0.0
        %1200 = vmatpush1.xpose.msra.mxu0 %v1132
        %1201 = vmatprep.subr.mxu0 0.0
        %1202 = vmatpush1.xpose.msra.mxu0 %v1129
        %1203 = vmatprep.subr.mxu0 0.0
        %1204 = vmatpush1.xpose.msra.mxu0 %v1126
        %1205 = vmatprep.subr.mxu0 0.0
        %1206 = vmatpush2.xpose.msra.mxu0 0.0
        %1207 = vmatprep.subr.mxu0 0.0
        %1208 = vmatpush2.xpose.msra.mxu0 0.0
        %1209 = vmatprep.subr.mxu0 0.0
        %1210 = vmatpush2.xpose.msra.mxu0 0.0
        %1211 = vmatprep.subr.mxu0 0.0
        %1212 = vmatpush2.xpose.msra.mxu0 0.0
        %1213 = vmatprep.subr.mxu0 0.0
        %1214 = vmatpush2.xpose.msra.mxu0 0.0
        %1215 = vmatprep.subr.mxu0 0.0
        %1216 = vmatpush2.xpose.msra.mxu0 0.0
        %1217 = vmatprep.subr.mxu0 0.0
        %1218 = vmatpush2.xpose.msra.mxu0 0.0
        %1219 = vmatprep.subr.mxu0 0.0
        %1220 = vmatpush2.xpose.msra.mxu0 0.0
        %1221 = vmatprep.subr.mxu0 0.0
        %1222 = vmatpush2.xpose.msra.mxu0 0.0
        %1223 = vmatprep.subr.mxu0 0.0
        %1224 = vmatpush2.xpose.msra.mxu0 0.0
        %1225 = vmatprep.subr.mxu0 0.0
        %1226 = vmatpush2.xpose.msra.mxu0 0.0
        %1227 = vmatprep.subr.mxu0 0.0
        %1228 = vmatpush2.xpose.msra.mxu0 0.0
        %1229 = vmatprep.subr.mxu0 0.0
        %1230 = vmatpush2.xpose.msra.mxu0 0.0
        %1231 = vmatprep.subr.mxu0 0.0
        %1232 = vmatpush2.xpose.msra.mxu0 0.0
        %1233 = vmatprep.subr.mxu0 0.0
        %1234 = vmatpush2.xpose.msra.mxu0 0.0
        %1235 = vmatprep.subr.mxu0 0.0
        %1236 = vmatpush2.xpose.msra.mxu0 0.0
        %1237 = vmatprep.mubr.f32.mxu0 0.0
        %1238 = vmatmul.mubr.f32.gmra.mxu0 %v1078
        %v1239 = vpop.f32.mrf.mxu0
        %v1240 = vadd.f32 0.0, %v1239
        %v1241 = vpop.f32.mrf.mxu0
        %1242 = vmatprep.mubr.f32.mxu0 0.0
        %1243 = vmatmul.mubr.f32.gmra.mxu0 %v1081
        %v1244 = vpop.f32.mrf.mxu0
        %v1245 = vadd.f32 0.0, %v1244
        %v1246 = vpop.f32.mrf.mxu0
        %1247 = vmatprep.mubr.f32.mxu0 0.0
        %1248 = vmatmul.mubr.f32.gmra.mxu0 %v1084
        %v1249 = vpop.f32.mrf.mxu0
        %v1250 = vadd.f32 0.0, %v1249
        %v1251 = vpop.f32.mrf.mxu0
        %1252 = vmatprep.mubr.f32.mxu0 0.0
        %1253 = vmatmul.mubr.f32.gmra.mxu0 %v1087
        %v1254 = vpop.f32.mrf.mxu0
        %v1255 = vadd.f32 0.0, %v1254
        %v1256 = vpop.f32.mrf.mxu0
        %1257 = vmatprep.mubr.f32.mxu0 0.0
        %1258 = vmatmul.mubr.f32.gmra.mxu0 %v1090
        %v1259 = vpop.f32.mrf.mxu0
        %v1260 = vadd.f32 0.0, %v1259
        %v1261 = vpop.f32.mrf.mxu0
        %1262 = vmatprep.mubr.f32.mxu0 0.0
        %1263 = vmatmul.mubr.f32.gmra.mxu0 %v1093
        %v1264 = vpop.f32.mrf.mxu0
        %v1265 = vadd.f32 0.0, %v1264
        %v1266 = vpop.f32.mrf.mxu0
        %1267 = vmatprep.mubr.f32.mxu0 0.0
        %1268 = vmatmul.mubr.f32.gmra.mxu0 %v1096
        %v1269 = vpop.f32.mrf.mxu0
        %v1270 = vadd.f32 0.0, %v1269
        %v1271 = vpop.f32.mrf.mxu0
        %1272 = vmatprep.mubr.f32.mxu0 0.0
        %1273 = vmatmul.mubr.f32.gmra.mxu0 %v1099
        %v1274 = vpop.f32.mrf.mxu0
        %v1275 = vadd.f32 0.0, %v1274
        %v1276 = vpop.f32.mrf.mxu0
        %1277 = vmatprep.mubr.f32.mxu0 0.0
        %1278 = vmatmul.mubr.f32.gmra.mxu0 %v1102
        %v1279 = vpop.f32.mrf.mxu0
        %v1280 = vadd.f32 0.0, %v1279
        %v1281 = vpop.f32.mrf.mxu0
        %1282 = vmatprep.mubr.f32.mxu0 0.0
        %1283 = vmatmul.mubr.f32.gmra.mxu0 %v1105
        %v1284 = vpop.f32.mrf.mxu0
        %v1285 = vadd.f32 0.0, %v1284
        %v1286 = vpop.f32.mrf.mxu0
        %1287 = vmatprep.mubr.f32.mxu0 0.0
        %1288 = vmatmul.mubr.f32.gmra.mxu0 %v1108
        %v1289 = vpop.f32.mrf.mxu0
        %v1290 = vadd.f32 0.0, %v1289
        %v1291 = vpop.f32.mrf.mxu0
        %1292 = vmatprep.mubr.f32.mxu0 0.0
        %1293 = vmatmul.mubr.f32.gmra.mxu0 %v1111
        %v1294 = vpop.f32.mrf.mxu0
        %v1295 = vadd.f32 0.0, %v1294
        %v1296 = vpop.f32.mrf.mxu0
        %1297 = vmatprep.mubr.f32.mxu0 0.0
        %1298 = vmatmul.mubr.f32.gmra.mxu0 %v1114
        %v1299 = vpop.f32.mrf.mxu0
        %v1300 = vadd.f32 0.0, %v1299
        %v1301 = vpop.f32.mrf.mxu0
        %1302 = vmatprep.mubr.f32.mxu0 0.0
        %1303 = vmatmul.mubr.f32.gmra.mxu0 %v1117
        %v1304 = vpop.f32.mrf.mxu0
        %v1305 = vadd.f32 0.0, %v1304
        %v1306 = vpop.f32.mrf.mxu0
        %1307 = vmatprep.mubr.f32.mxu0 0.0
        %1308 = vmatmul.mubr.f32.gmra.mxu0 %v1120
        %v1309 = vpop.f32.mrf.mxu0
        %v1310 = vadd.f32 0.0, %v1309
        %v1311 = vpop.f32.mrf.mxu0
        %1312 = vmatprep.mubr.f32.mxu0 0.0
        %1313 = vmatmul.mubr.f32.gmra.mxu0 %v1123
        %v1314 = vpop.f32.mrf.mxu0
        %v1315 = vadd.f32 0.0, %v1314
        %v1316 = vpop.f32.mrf.mxu0
        %1317 = vdwg.mxu0
        %v1318 = vxor.u32 %v1240, 2147483648
        %v1319 = vxor.u32 %v1245, 2147483648
        %v1320 = vxor.u32 %v1250, 2147483648
        %v1321 = vxor.u32 %v1255, 2147483648
        %v1322 = vxor.u32 %v1260, 2147483648
        %v1323 = vxor.u32 %v1265, 2147483648
        %v1324 = vxor.u32 %v1270, 2147483648
        %v1325 = vxor.u32 %v1275, 2147483648
        %v1326 = vxor.u32 %v1280, 2147483648
        %v1327 = vxor.u32 %v1285, 2147483648
        %v1328 = vxor.u32 %v1290, 2147483648
        %v1329 = vxor.u32 %v1295, 2147483648
        %v1330 = vxor.u32 %v1300, 2147483648
        %v1331 = vxor.u32 %v1305, 2147483648
        %v1332 = vxor.u32 %v1310, 2147483648
        %v1333 = vxor.u32 %v1315, 2147483648
        %v1334 = vmul.f32 %v1318, 1.442695
        %v1335 = vpow.pop %v1334
        %v1336 = vmul.f32 %v1319, 1.442695
        %v1337 = vpow.pop %v1336
        %v1338 = vmul.f32 %v1320, 1.442695
        %v1339 = vpow.pop %v1338
        %v1340 = vmul.f32 %v1321, 1.442695
        %v1341 = vpow.pop %v1340
        %v1342 = vmul.f32 %v1322, 1.442695
        %v1343 = vpow.pop %v1342
        %v1344 = vmul.f32 %v1323, 1.442695
        %v1345 = vpow.pop %v1344
        %v1346 = vmul.f32 %v1324, 1.442695
        %v1347 = vpow.pop %v1346
        %v1348 = vmul.f32 %v1325, 1.442695
        %v1349 = vpow.pop %v1348
        %v1350 = vmul.f32 %v1326, 1.442695
        %v1351 = vpow.pop %v1350
        %v1352 = vmul.f32 %v1327, 1.442695
        %v1353 = vpow.pop %v1352
        %v1354 = vmul.f32 %v1328, 1.442695
        %v1355 = vpow.pop %v1354
        %v1356 = vmul.f32 %v1329, 1.442695
        %v1357 = vpow.pop %v1356
        %v1358 = vmul.f32 %v1330, 1.442695
        %v1359 = vpow.pop %v1358
        %v1360 = vmul.f32 %v1331, 1.442695
        %v1361 = vpow.pop %v1360
        %v1362 = vmul.f32 %v1332, 1.442695
        %v1363 = vpow.pop %v1362
        %v1364 = vmul.f32 %v1333, 1.442695
        %v1365 = vpow.pop %v1364
        %v1366 = vadd.f32 %v1335, 1.0
        %v1367 = vadd.f32 %v1337, 1.0
        %v1368 = vadd.f32 %v1339, 1.0
        %v1369 = vadd.f32 %v1341, 1.0
        %v1370 = vadd.f32 %v1343, 1.0
        %v1371 = vadd.f32 %v1345, 1.0
        %v1372 = vadd.f32 %v1347, 1.0
        %v1373 = vadd.f32 %v1349, 1.0
        %v1374 = vadd.f32 %v1351, 1.0
        %v1375 = vadd.f32 %v1353, 1.0
        %v1376 = vadd.f32 %v1355, 1.0
        %v1377 = vadd.f32 %v1357, 1.0
        %v1378 = vadd.f32 %v1359, 1.0
        %v1379 = vadd.f32 %v1361, 1.0
        %v1380 = vadd.f32 %v1363, 1.0
        %v1381 = vadd.f32 %v1365, 1.0
        %v1382 = vrcp.pop %v1366
        %v1383 = vmul.f32 1.0, %v1382
        %v1384 = vrcp.pop %v1367
        %v1385 = vmul.f32 1.0, %v1384
        %v1386 = vrcp.pop %v1368
        %v1387 = vmul.f32 1.0, %v1386
        %v1388 = vrcp.pop %v1369
        %v1389 = vmul.f32 1.0, %v1388
        %v1390 = vrcp.pop %v1370
        %v1391 = vmul.f32 1.0, %v1390
        %v1392 = vrcp.pop %v1371
        %v1393 = vmul.f32 1.0, %v1392
        %v1394 = vrcp.pop %v1372
        %v1395 = vmul.f32 1.0, %v1394
        %v1396 = vrcp.pop %v1373
        %v1397 = vmul.f32 1.0, %v1396
        %v1398 = vrcp.pop %v1374
        %v1399 = vmul.f32 1.0, %v1398
        %v1400 = vrcp.pop %v1375
        %v1401 = vmul.f32 1.0, %v1400
        %v1402 = vrcp.pop %v1376
        %v1403 = vmul.f32 1.0, %v1402
        %v1404 = vrcp.pop %v1377
        %v1405 = vmul.f32 1.0, %v1404
        %v1406 = vrcp.pop %v1378
        %v1407 = vmul.f32 1.0, %v1406
        %v1408 = vrcp.pop %v1379
        %v1409 = vmul.f32 1.0, %v1408
        %v1410 = vrcp.pop %v1380
        %v1411 = vmul.f32 1.0, %v1410
        %v1412 = vrcp.pop %v1381
        %v1413 = vmul.f32 1.0, %v1412
        %1414 = vst [vmem:[%s244] sm:$0xff] %v1383
        %1415 = vst [vmem:[%s244 + $0x8] sm:$0xff] %v1385
        %1416 = vst [vmem:[%s244 + $0x10] sm:$0xff] %v1387
        %1417 = vst [vmem:[%s244 + $0x18] sm:$0xff] %v1389
        %1418 = vst [vmem:[%s244 + $0x20] sm:$0xff] %v1391
        %1419 = vst [vmem:[%s244 + $0x28] sm:$0xff] %v1393
        %1420 = vst [vmem:[%s244 + $0x30] sm:$0xff] %v1395
        %1421 = vst [vmem:[%s244 + $0x38] sm:$0xff] %v1397
        %1422 = vst [vmem:[%s244 + $0x40] sm:$0xff] %v1399
        %1423 = vst [vmem:[%s244 + $0x48] sm:$0xff] %v1401
        %1424 = vst [vmem:[%s244 + $0x50] sm:$0xff] %v1403
        %1425 = vst [vmem:[%s244 + $0x58] sm:$0xff] %v1405
        %1426 = vst [vmem:[%s244 + $0x60] sm:$0xff] %v1407
        %1427 = vst [vmem:[%s244 + $0x68] sm:$0xff] %v1409
        %1428 = vst [vmem:[%s244 + $0x70] sm:$0xff] %v1411
        %1429 = vst [vmem:[%s244 + $0x78] sm:$0xff] %v1413
        %v1430 = vld [vmem:[%s257] sm:$0xff]
        %v1431 = vld [vmem:[%s257 + $0x8] sm:$0xff]
        %v1432 = vld [vmem:[%s257 + $0x10] sm:$0xff]
        %v1433 = vld [vmem:[%s257 + $0x18] sm:$0xff]
        %v1434 = vld [vmem:[%s257 + $0x20] sm:$0xff]
        %v1435 = vld [vmem:[%s257 + $0x28] sm:$0xff]
        %v1436 = vld [vmem:[%s257 + $0x30] sm:$0xff]
        %v1437 = vld [vmem:[%s257 + $0x38] sm:$0xff]
        %v1438 = vld [vmem:[%s257 + $0x40] sm:$0xff]
        %v1439 = vld [vmem:[%s257 + $0x48] sm:$0xff]
        %v1440 = vld [vmem:[%s257 + $0x50] sm:$0xff]
        %v1441 = vld [vmem:[%s257 + $0x58] sm:$0xff]
        %v1442 = vld [vmem:[%s257 + $0x60] sm:$0xff]
        %v1443 = vld [vmem:[%s257 + $0x68] sm:$0xff]
        %v1444 = vld [vmem:[%s257 + $0x70] sm:$0xff]
        %v1445 = vld [vmem:[%s257 + $0x78] sm:$0xff]
        %1446 = vadd.xlane.f32.xlu0 %v1383
        %v1447 = vpop.xlane.xlu0 %1446
        %1448 = vadd.xlane.f32.xlu0 %v1385
        %v1449 = vpop.xlane.xlu0 %1448
        %1450 = vadd.xlane.f32.xlu0 %v1387
        %v1451 = vpop.xlane.xlu0 %1450
        %1452 = vadd.xlane.f32.xlu0 %v1389
        %v1453 = vpop.xlane.xlu0 %1452
        %1454 = vadd.xlane.f32.xlu0 %v1391
        %v1455 = vpop.xlane.xlu0 %1454
        %1456 = vadd.xlane.f32.xlu0 %v1393
        %v1457 = vpop.xlane.xlu0 %1456
        %1458 = vadd.xlane.f32.xlu0 %v1395
        %v1459 = vpop.xlane.xlu0 %1458
        %1460 = vadd.xlane.f32.xlu0 %v1397
        %v1461 = vpop.xlane.xlu0 %1460
        %1462 = vadd.xlane.f32.xlu0 %v1399
        %v1463 = vpop.xlane.xlu0 %1462
        %1464 = vadd.xlane.f32.xlu0 %v1401
        %v1465 = vpop.xlane.xlu0 %1464
        %1466 = vadd.xlane.f32.xlu0 %v1403
        %v1467 = vpop.xlane.xlu0 %1466
        %1468 = vadd.xlane.f32.xlu0 %v1405
        %v1469 = vpop.xlane.xlu0 %1468
        %1470 = vadd.xlane.f32.xlu0 %v1407
        %v1471 = vpop.xlane.xlu0 %1470
        %1472 = vadd.xlane.f32.xlu0 %v1409
        %v1473 = vpop.xlane.xlu0 %1472
        %1474 = vadd.xlane.f32.xlu0 %v1411
        %v1475 = vpop.xlane.xlu0 %1474
        %1476 = vadd.xlane.f32.xlu0 %v1413
        %v1477 = vpop.xlane.xlu0 %1476
        %v1478 = vadd.f32 %v1430, %v1447
        %v1479 = vadd.f32 %v1431, %v1449
        %v1480 = vadd.f32 %v1432, %v1451
        %v1481 = vadd.f32 %v1433, %v1453
        %v1482 = vadd.f32 %v1434, %v1455
        %v1483 = vadd.f32 %v1435, %v1457
        %v1484 = vadd.f32 %v1436, %v1459
        %v1485 = vadd.f32 %v1437, %v1461
        %v1486 = vadd.f32 %v1438, %v1463
        %v1487 = vadd.f32 %v1439, %v1465
        %v1488 = vadd.f32 %v1440, %v1467
        %v1489 = vadd.f32 %v1441, %v1469
        %v1490 = vadd.f32 %v1442, %v1471
        %v1491 = vadd.f32 %v1443, %v1473
        %v1492 = vadd.f32 %v1444, %v1475
        %v1493 = vadd.f32 %v1445, %v1477
        %vm1494 = vcmask 7168
        %1495 = vst.msk [vmem:[%s257] sm:$0xff] %vm1494, %v1478
        %1496 = vst.msk [vmem:[%s257 + $0x8] sm:$0xff] %vm1494, %v1479
        %1497 = vst.msk [vmem:[%s257 + $0x10] sm:$0xff] %vm1494, %v1480
        %1498 = vst.msk [vmem:[%s257 + $0x18] sm:$0xff] %vm1494, %v1481
        %1499 = vst.msk [vmem:[%s257 + $0x20] sm:$0xff] %vm1494, %v1482
        %1500 = vst.msk [vmem:[%s257 + $0x28] sm:$0xff] %vm1494, %v1483
        %1501 = vst.msk [vmem:[%s257 + $0x30] sm:$0xff] %vm1494, %v1484
        %1502 = vst.msk [vmem:[%s257 + $0x38] sm:$0xff] %vm1494, %v1485
        %1503 = vst.msk [vmem:[%s257 + $0x40] sm:$0xff] %vm1494, %v1486
        %1504 = vst.msk [vmem:[%s257 + $0x48] sm:$0xff] %vm1494, %v1487
        %1505 = vst.msk [vmem:[%s257 + $0x50] sm:$0xff] %vm1494, %v1488
        %1506 = vst.msk [vmem:[%s257 + $0x58] sm:$0xff] %vm1494, %v1489
        %1507 = vst.msk [vmem:[%s257 + $0x60] sm:$0xff] %vm1494, %v1490
        %1508 = vst.msk [vmem:[%s257 + $0x68] sm:$0xff] %vm1494, %v1491
        %1509 = vst.msk [vmem:[%s257 + $0x70] sm:$0xff] %vm1494, %v1492
        %1510 = vst.msk [vmem:[%s257 + $0x78] sm:$0xff] %vm1494, %v1493
        %s1511 = sand.u32 %s148, 1
        %s1512 = scalar_lea.sflag [#allocation4], %s1511
        %s1513 = sand.u32 %s148, 1
        %s1514 = smul.addr %s1513, 128
        %s1515 = scalar_lea.vmem [#allocation3], %s1514
        %s1516 = smul.u32 16, %s25
        %p1517 = scmp.lt.s32.totalorder %s1516, 31
        %s1518 = scalar_select %p1517, %s1516, 31
        %s1519 = smul.addr %s1518, 8
        %s1520 = scalar_lea.vmem %s6, %s1519
        // Predicated region
        $region45: #{net3_forward.2} parent=39 // pred_check
          %p1521 = pneg %p158
        $region46: #{net3_forward.2} parent=39 // pred_check_branch
          %1523 = sbr.rel (%p1521) target = $region48
        $region47: #{net3_forward.2} parent=39 // pred_region
          %s1524 = smul.u32 16, %s25
          %s1526 = ssub.s32 2048, 2048
          %1527 = vsyncadd %s1512, %s1526
          %s1528 = smul.addr %s1524, 2
          %s1529 = sadd.s32 %s26, %s1528
          %s1530 = smul.addr %s1529, 128
          %s1531 = scalar_lea.hbm %s5, %s1530
          %s1532 = sshll.u32 %s1515, 4
          %s1533 = int_to_ptr.vmem [resolvable:$true] %s1532
          %1538 = dma.vmem_to_hbm [thread:$0]  %s1533, 2048, %s1531, %s1512, 128, 256, 8
        $region48: #{net3_forward.2} parent=39 // pred_fallthru
          _
        // Predicated region
        $region49: #{net3_forward.2} parent=39 // pred_check
          %p1539 = pneg %p184
        $region50: #{net3_forward.2} parent=39 // pred_check_branch
          %1541 = sbr.rel (%p1539) target = $region52
        $region51: #{net3_forward.2} parent=39 // pred_region
          %s1542 = smul.u32 16, %s25
        $region52: #{net3_forward.2} parent=39 // pred_fallthru
          _
      $region40: #{net3_forward.2} parent=5 // pred_fallthru
        _
      %p1543 = scmp.le.s32.totalorder 2, %s16
      // Predicated region
      $region53: #{net3_forward.2} parent=5 // pred_check
        %p1544 = pneg %p1543
      $region54: #{net3_forward.2} parent=5 // pred_check_branch
        %1546 = sbr.rel (%p1544) target = $region56
      $region55: #{net3_forward.2} parent=5 // pred_region
        %s1547 = ssub.s32 %s16, 2
        // Predicated region
        $region57: #{net3_forward.2} parent=55 // pred_check
          %p1548 = pneg %p164
        $region58: #{net3_forward.2} parent=55 // pred_check_branch
          %1550 = sbr.rel (%p1548) target = $region60
        $region59: #{net3_forward.2} parent=55 // pred_region
          %s1551 = sand.u32 %s149, 1
          %s1552 = scalar_lea.sflag [#allocation4], %s1551
          %s1553 = sand.u32 %s149, 1
          %s1554 = smul.addr %s1553, 128
          %s1555 = scalar_lea.vmem [#allocation3], %s1554
          %1556 = dma.done %s1552, 2048
        $region60: #{net3_forward.2} parent=55 // pred_fallthru
          _
        // Predicated region
        $region61: #{net3_forward.2} parent=55 // pred_check
          %p1557 = pneg %p190
        $region62: #{net3_forward.2} parent=55 // pred_check_branch
          %1559 = sbr.rel (%p1557) target = $region64
        $region63: #{net3_forward.2} parent=55 // pred_region
          %s1560 = smul.u32 16, %s27
          %p1561 = scmp.lt.s32.totalorder %s1560, 31
          %s1562 = scalar_select %p1561, %s1560, 31
          %s1563 = smul.addr %s1562, 8
          %s1564 = scalar_lea.vmem %s6, %s1563
        $region64: #{net3_forward.2} parent=55 // pred_fallthru
          _
      $region56: #{net3_forward.2} parent=5 // pred_fallthru
        _
    $region6: #{net3_forward.2} parent=1 // loop_footer
      %s20 = sadd.s32 1, %s16
    $region7: #{net3_forward.2} parent=1 // loop_footer_branch
      %15 = sbr.rel target = $region3
    $region8: #{net3_forward.2} parent=1 // loop_exit
      _
    %1565 = vsyncpa [#allocation4], 1
    %s1566 = scalar_lea.sflag [#allocation4], 1
    %1567 = vsyncpa %s1566, 1

</llo_original>
